<compile_context>
chip_gen: v7x
topology: tpu7x:2x2x1
jax: 0.10.0
libtpu: 0.0.40
codegen_flags: <defaults>
</compile_context>

<pallas_src>
import jax
import jax.numpy as jnp
from jax import lax
from jax.experimental import pallas as pl
from jax.experimental.pallas import tpu as pltpu


_FC_PAD = 128  # lane-dense output width for the FC head


# ----------------------------------------------------------------------------
# Fused Pallas kernel: stacked LSTM (num_layers) + time-distributed FC.
# ----------------------------------------------------------------------------
def make_fused_kernel(num_layers, seq_len, batch, hidden):
    S, B, H = seq_len, batch, hidden

    def kernel(*refs):
        # refs = x_slab, (w_ih_t, w_hh_t, b) * L, w_fc_t, b_fc, out, h_all
        x_ref = refs[0]
        layer_refs = refs[1:1 + 3 * num_layers]
        wfc_ref = refs[1 + 3 * num_layers]
        bfc_ref = refs[2 + 3 * num_layers]
        out_ref = refs[3 + 3 * num_layers]
        hall_ref = refs[4 + 3 * num_layers]

        inp = x_ref[...].astype(jnp.bfloat16)              # (S*B, D)
        for l in range(num_layers):
            # Weight loads hoisted out of the unrolled time loop: read once
            # per layer, reused as vreg-resident values every step.
            wih = layer_refs[3 * l][...]                   # (in, 4H) bf16
            whh = layer_refs[3 * l + 1][...]               # (H, 4H)  bf16
            b = layer_refs[3 * l + 2][...]                 # (1, 4H)  f32

            # Non-recurrent input projection + folded bias, batched over all
            # S time steps: one (S*B, in) x (in, 4H) MXU matmul per layer.
            gates_x = (jnp.dot(inp, wih,
                               preferred_element_type=jnp.float32)
                       + b)                                # (S*B, 4H) f32

            h = jnp.zeros((B, H), jnp.float32)
            c = jnp.zeros((B, H), jnp.float32)
            # Serial recurrence: only h @ W_hh left on the critical path.
            for t in range(S):
                gates = gates_x[t * B:(t + 1) * B, :] + jnp.dot(
                    h.astype(jnp.bfloat16), whh,
                    preferred_element_type=jnp.float32)    # (B, 4H) f32
                # PyTorch gate order: input, forget, cell(g), output
                i = jax.nn.sigmoid(gates[:, 0 * H:1 * H])
                f = jax.nn.sigmoid(gates[:, 1 * H:2 * H])
                g = jnp.tanh(gates[:, 2 * H:3 * H])
                o = jax.nn.sigmoid(gates[:, 3 * H:4 * H])
                c = f * c + i * g
                h = o * jnp.tanh(c)
                hall_ref[t * B:(t + 1) * B, :] = h         # inter-layer slab
            inp = hall_ref[...].astype(jnp.bfloat16)       # (S*B, H)

        # Lane-dense FC epilogue: one matmul over the whole slab, one
        # unmasked full-width (128-lane) store.
        out_ref[...] = (jnp.dot(inp, wfc_ref[...],
                                preferred_element_type=jnp.float32)
                        + bfc_ref[...]).astype(out_ref.dtype)

    return kernel


# ----------------------------------------------------------------------------
# One-time weight prep (hoisted out of the forward pass)
# ----------------------------------------------------------------------------
def prepare_params(params):
    """Transpose weights to (in,4H)/(H,4H)/(H,O), fold the two LSTM biases,
    cast MXU operands to bf16, zero-pad the FC head to 128 output lanes."""
    prepped = {"lstm": []}
    for (w_ih, w_hh, b_ih, b_hh) in params["lstm"]:
        prepped["lstm"].append((
            jnp.transpose(w_ih).astype(jnp.bfloat16),            # (in, 4H)
            jnp.transpose(w_hh).astype(jnp.bfloat16),            # (H, 4H)
            (b_ih + b_hh).reshape(1, -1).astype(jnp.float32),    # (1, 4H)
        ))
    O, H = params["fc_w"].shape
    w_fc_t = jnp.zeros((H, _FC_PAD), jnp.float32).at[:, :O].set(
        jnp.transpose(params["fc_w"]))
    b_fc = jnp.zeros((1, _FC_PAD), jnp.float32).at[:, :O].set(
        params["fc_b"].reshape(1, -1))
    prepped["fc_w_t"] = w_fc_t.astype(jnp.bfloat16)              # (H, 128)
    prepped["fc_b"] = b_fc                                       # (1, 128)
    return prepped


# ----------------------------------------------------------------------------
# Forward wrapper
# ----------------------------------------------------------------------------
def simple_lstm_many2many_forward(x, prepped, *, num_output):
    """Equivalent of simpleLSTM_many2many.forward (dropout=0, bi=False).
    x: (B, S, input_size) batch-first -> (B, S, num_output)."""
    B, S, D = x.shape
    lstm_p = prepped["lstm"]
    L = len(lstm_p)
    H = lstm_p[0][1].shape[0]
    w_fc_t = prepped["fc_w_t"]                       # (H, 128) bf16
    b_fc = prepped["fc_b"]                           # (1, 128) f32
    OP = w_fc_t.shape[1]

    # Time-major slab: rows [t*B:(t+1)*B] hold time step t.
    x_slab = jnp.transpose(x.astype(jnp.float32), (1, 0, 2)).reshape(S * B, D)

    flat = []
    for (wih, whh, b) in lstm_p:
        flat.extend([wih, whh, b])

    out2d = pl.pallas_call(
        make_fused_kernel(L, S, B, H),
        out_shape=jax.ShapeDtypeStruct((S * B, OP), jnp.float32),
        scratch_shapes=[pltpu.VMEM((S * B, H), jnp.float32)],    # h_all slab
    )(x_slab, *flat, w_fc_t, b_fc)

    out = out2d[:, :num_output].reshape(S, B, num_output)
    return jnp.transpose(out, (1, 0, 2))             # (B, S, O)


# ----------------------------------------------------------------------------
# Deterministic parameter init (mimics PyTorch LSTM/Linear default uniform)
# ----------------------------------------------------------------------------
def init_params(key, input_size, hidden_size, num_layers, num_output):
    params = {"lstm": []}
    k = 1.0 / jnp.sqrt(jnp.float32(hidden_size))
    for layer in range(num_layers):
        in_dim = input_size if layer == 0 else hidden_size
        key, k1, k2, k3, k4 = jax.random.split(key, 5)
        w_ih = jax.random.uniform(k1, (4 * hidden_size, in_dim),
                                  jnp.float32, -k, k)
        w_hh = jax.random.uniform(k2, (4 * hidden_size, hidden_size),
                                  jnp.float32, -k, k)
        b_ih = jax.random.uniform(k3, (4 * hidden_size,), jnp.float32, -k, k)
        b_hh = jax.random.uniform(k4, (4 * hidden_size,), jnp.float32, -k, k)
        params["lstm"].append((w_ih, w_hh, b_ih, b_hh))
    key, k5, k6 = jax.random.split(key, 3)
    params["fc_w"] = jax.random.uniform(k5, (num_output, hidden_size),
                                        jnp.float32, -k, k)
    params["fc_b"] = jax.random.uniform(k6, (num_output,), jnp.float32, -k, k)
    return params


# ----------------------------------------------------------------------------
# Pure-JAX f32 reference (PyTorch-equivalent math, lax.scan)
# ----------------------------------------------------------------------------
def reference_forward(x, params):
    def layer(x_seq, w_ih, w_hh, b_ih, b_hh):
        B = x_seq.shape[0]
        H = w_hh.shape[1]

        def step(carry, x_t):
            h, c = carry
            gates = x_t @ w_ih.T + h @ w_hh.T + b_ih + b_hh
            i, f, g, o = jnp.split(gates, 4, axis=-1)
            i, f, o = jax.nn.sigmoid(i), jax.nn.sigmoid(f), jax.nn.sigmoid(o)
            g = jnp.tanh(g)
            c = f * c + i * g
            h = o * jnp.tanh(c)
            return (h, c), h

        h0 = jnp.zeros((B, H), jnp.float32)
        c0 = jnp.zeros((B, H), jnp.float32)
        _, hs = lax.scan(step, (h0, c0), jnp.transpose(x_seq, (1, 0, 2)))
        return jnp.transpose(hs, (1, 0, 2))

    h = x.astype(jnp.float32)
    for (w_ih, w_hh, b_ih, b_hh) in params["lstm"]:
        h = layer(h, w_ih, w_hh, b_ih, b_hh)
    return h @ params["fc_w"].T + params["fc_b"]


# ----------------------------------------------------------------------------
# Plain-JAX mirror of the kernel's exact mixed-precision scheme
# (bf16 MXU operands, f32 accumulation / elementwise) for a tight check.
# ----------------------------------------------------------------------------
def mirror_reference(x, prepped, num_output):
    B, S, D = x.shape
    H = prepped["lstm"][0][1].shape[0]
    inp = jnp.transpose(x.astype(jnp.float32), (1, 0, 2)).reshape(S * B, D)
    inp = inp.astype(jnp.bfloat16)
    for (wih, whh, b) in prepped["lstm"]:
        gates_x = jnp.dot(inp, wih, preferred_element_type=jnp.float32) + b
        h = jnp.zeros((B, H), jnp.float32)
        c = jnp.zeros((B, H), jnp.float32)
        hs = []
        for t in range(S):
            gates = gates_x[t * B:(t + 1) * B, :] + jnp.dot(
                h.astype(jnp.bfloat16), whh,
                preferred_element_type=jnp.float32)
            i = jax.nn.sigmoid(gates[:, 0 * H:1 * H])
            f = jax.nn.sigmoid(gates[:, 1 * H:2 * H])
            g = jnp.tanh(gates[:, 2 * H:3 * H])
            o = jax.nn.sigmoid(gates[:, 3 * H:4 * H])
            c = f * c + i * g
            h = o * jnp.tanh(c)
            hs.append(h)
        inp = jnp.concatenate(hs, axis=0).astype(jnp.bfloat16)
    out = (jnp.dot(inp, prepped["fc_w_t"],
                   preferred_element_type=jnp.float32)
           + prepped["fc_b"])[:, :num_output]
    return jnp.transpose(out.reshape(S, B, num_output), (1, 0, 2))


# ----------------------------------------------------------------------------
if __name__ == "__main__":
    # simpleLSTM_many2many(input_size=16, hidden_size=32, num_layers=2,
    #                      num_output=4, bi=False, dropout=0)
    B, S, D, H, L, O = 2, 8, 16, 32, 2, 4

    key = jax.random.PRNGKey(0)
    key, xk = jax.random.split(key)
    x = jax.random.normal(xk, (B, S, D), jnp.float32)
    params = init_params(key, D, H, L, O)

    # Hoisted one-time weight prep (transposes + bias fold + bf16 cast + pad).
    prepped = prepare_params(params)

    fwd = jax.jit(simple_lstm_many2many_forward,
                  static_argnames=("num_output",))
    out = fwd(x, prepped, num_output=O)
    out = jax.block_until_ready(out)
    assert out.shape == (B, S, O), out.shape

    # 1) Tight check against a plain-JAX mirror of the kernel's exact
    #    mixed-precision scheme (validates the Pallas lowering itself).
    mirror = mirror_reference(x, prepped, O)
    err_mirror = float(jnp.max(jnp.abs(out - mirror)))
    assert jnp.allclose(out, mirror, atol=1e-3, rtol=1e-3), err_mirror

    # 2) Looser check against the full-f32 PyTorch-equivalent reference;
    #    slack covers the bf16 MXU-operand quantization (~0.2% relative).
    ref = reference_forward(x, params)
    err_ref = float(jnp.max(jnp.abs(out - ref)))
    assert jnp.allclose(out, ref, atol=2e-2, rtol=2e-2), err_ref

    print("KERNEL_OK")
</pallas_src>

<mosaic_0001>
module attributes {stable_mosaic.version = 11 : i64} {
  func.func @kernel(%arg0: memref<16x16xf32, #tpu.memory_space<vmem>>, %arg1: memref<16x128xbf16, #tpu.memory_space<vmem>>, %arg2: memref<32x128xbf16, #tpu.memory_space<vmem>>, %arg3: memref<1x128xf32, #tpu.memory_space<vmem>>, %arg4: memref<32x128xbf16, #tpu.memory_space<vmem>>, %arg5: memref<32x128xbf16, #tpu.memory_space<vmem>>, %arg6: memref<1x128xf32, #tpu.memory_space<vmem>>, %arg7: memref<32x128xbf16, #tpu.memory_space<vmem>>, %arg8: memref<1x128xf32, #tpu.memory_space<vmem>>, %arg9: memref<16x128xf32, #tpu.memory_space<vmem>>, %arg10: memref<16x32xf32, #tpu.memory_space<vmem>>) attributes {dimension_semantics = [], scalar_prefetch = 0 : i64, scratch_operands = 1 : i64, tpu.core_type = #tpu.core_type<tc>} {
    %c0 = arith.constant 0 : index
    %c0_0 = arith.constant 0 : index
    %0 = vector.load %arg0[%c0, %c0_0] : memref<16x16xf32, #tpu.memory_space<vmem>>, vector<16x16xf32>
    %1 = arith.truncf %0 : vector<16x16xf32> to vector<16x16xbf16>
    %c0_1 = arith.constant 0 : index
    %c0_2 = arith.constant 0 : index
    %2 = vector.load %arg1[%c0_1, %c0_2] : memref<16x128xbf16, #tpu.memory_space<vmem>>, vector<16x128xbf16>
    %c0_3 = arith.constant 0 : index
    %c0_4 = arith.constant 0 : index
    %3 = vector.load %arg2[%c0_3, %c0_4] : memref<32x128xbf16, #tpu.memory_space<vmem>>, vector<32x128xbf16>
    %c0_5 = arith.constant 0 : index
    %c0_6 = arith.constant 0 : index
    %4 = vector.load %arg3[%c0_5, %c0_6] : memref<1x128xf32, #tpu.memory_space<vmem>>, vector<1x128xf32>
    %cst = arith.constant dense<0.000000e+00> : vector<16x128xf32>
    %5 = tpu.matmul %1, %2, %cst {dimension_numbers = #tpu.dot_dimension_numbers<[1], [0], [0], [1], [0, 0, 1, 1], [], []>} : vector<16x16xbf16>, vector<16x128xbf16>, vector<16x128xf32> -> vector<16x128xf32>
    %6 = vector.broadcast %4 : vector<1x128xf32> to vector<16x128xf32>
    %7 = arith.addf %5, %6 : vector<16x128xf32>
    %cst_7 = arith.constant 0.000000e+00 : f32
    %8 = vector.broadcast %cst_7 : f32 to vector<2x32xf32>
    %cst_8 = arith.constant 0.000000e+00 : f32
    %9 = vector.broadcast %cst_8 : f32 to vector<2x32xf32>
    %10 = vector.extract_strided_slice %7 {offsets = [0, 0], sizes = [2, 128], strides = [1, 1]} : vector<16x128xf32> to vector<2x128xf32>
    %11 = arith.truncf %8 : vector<2x32xf32> to vector<2x32xbf16>
    %cst_9 = arith.constant dense<0.000000e+00> : vector<2x128xf32>
    %12 = tpu.matmul %11, %3, %cst_9 {dimension_numbers = #tpu.dot_dimension_numbers<[1], [0], [0], [1], [0, 0, 1, 1], [], []>} : vector<2x32xbf16>, vector<32x128xbf16>, vector<2x128xf32> -> vector<2x128xf32>
    %13 = arith.addf %10, %12 : vector<2x128xf32>
    %14 = vector.extract_strided_slice %13 {offsets = [0, 0], sizes = [2, 32], strides = [1, 1]} : vector<2x128xf32> to vector<2x32xf32>
    %15 = arith.negf %14 : vector<2x32xf32>
    %16 = math.exp %15 : vector<2x32xf32>
    %cst_10 = arith.constant 1.000000e+00 : f32
    %17 = vector.broadcast %cst_10 : f32 to vector<2x32xf32>
    %18 = arith.addf %17, %16 : vector<2x32xf32>
    %19 = arith.divf %17, %18 : vector<2x32xf32>
    %20 = vector.extract_strided_slice %13 {offsets = [0, 32], sizes = [2, 32], strides = [1, 1]} : vector<2x128xf32> to vector<2x32xf32>
    %21 = arith.negf %20 : vector<2x32xf32>
    %22 = math.exp %21 : vector<2x32xf32>
    %cst_11 = arith.constant 1.000000e+00 : f32
    %23 = vector.broadcast %cst_11 : f32 to vector<2x32xf32>
    %24 = arith.addf %23, %22 : vector<2x32xf32>
    %25 = arith.divf %23, %24 : vector<2x32xf32>
    %26 = vector.extract_strided_slice %13 {offsets = [0, 64], sizes = [2, 32], strides = [1, 1]} : vector<2x128xf32> to vector<2x32xf32>
    %27 = math.tanh %26 : vector<2x32xf32>
    %28 = vector.extract_strided_slice %13 {offsets = [0, 96], sizes = [2, 32], strides = [1, 1]} : vector<2x128xf32> to vector<2x32xf32>
    %29 = arith.negf %28 : vector<2x32xf32>
    %30 = math.exp %29 : vector<2x32xf32>
    %cst_12 = arith.constant 1.000000e+00 : f32
    %31 = vector.broadcast %cst_12 : f32 to vector<2x32xf32>
    %32 = arith.addf %31, %30 : vector<2x32xf32>
    %33 = arith.divf %31, %32 : vector<2x32xf32>
    %34 = arith.mulf %25, %9 : vector<2x32xf32>
    %35 = arith.mulf %19, %27 : vector<2x32xf32>
    %36 = arith.addf %34, %35 : vector<2x32xf32>
    %37 = math.tanh %36 : vector<2x32xf32>
    %38 = arith.mulf %33, %37 : vector<2x32xf32>
    %c0_13 = arith.constant 0 : index
    %c0_14 = arith.constant 0 : index
    %39 = vector.load %arg10[%c0_13, %c0_14] : memref<16x32xf32, #tpu.memory_space<vmem>>, vector<2x32xf32>
    tpu.vector_store %arg10[%c0_13, %c0_14], %38 {strides = array<i32>} : memref<16x32xf32, #tpu.memory_space<vmem>>, vector<2x32xf32>,
    %40 = vector.extract_strided_slice %7 {offsets = [2, 0], sizes = [2, 128], strides = [1, 1]} : vector<16x128xf32> to vector<2x128xf32>
    %41 = arith.truncf %38 : vector<2x32xf32> to vector<2x32xbf16>
    %cst_15 = arith.constant dense<0.000000e+00> : vector<2x128xf32>
    %42 = tpu.matmul %41, %3, %cst_15 {dimension_numbers = #tpu.dot_dimension_numbers<[1], [0], [0], [1], [0, 0, 1, 1], [], []>} : vector<2x32xbf16>, vector<32x128xbf16>, vector<2x128xf32> -> vector<2x128xf32>
    %43 = arith.addf %40, %42 : vector<2x128xf32>
    %44 = vector.extract_strided_slice %43 {offsets = [0, 0], sizes = [2, 32], strides = [1, 1]} : vector<2x128xf32> to vector<2x32xf32>
    %45 = arith.negf %44 : vector<2x32xf32>
    %46 = math.exp %45 : vector<2x32xf32>
    %cst_16 = arith.constant 1.000000e+00 : f32
    %47 = vector.broadcast %cst_16 : f32 to vector<2x32xf32>
    %48 = arith.addf %47, %46 : vector<2x32xf32>
    %49 = arith.divf %47, %48 : vector<2x32xf32>
    %50 = vector.extract_strided_slice %43 {offsets = [0, 32], sizes = [2, 32], strides = [1, 1]} : vector<2x128xf32> to vector<2x32xf32>
    %51 = arith.negf %50 : vector<2x32xf32>
    %52 = math.exp %51 : vector<2x32xf32>
    %cst_17 = arith.constant 1.000000e+00 : f32
    %53 = vector.broadcast %cst_17 : f32 to vector<2x32xf32>
    %54 = arith.addf %53, %52 : vector<2x32xf32>
    %55 = arith.divf %53, %54 : vector<2x32xf32>
    %56 = vector.extract_strided_slice %43 {offsets = [0, 64], sizes = [2, 32], strides = [1, 1]} : vector<2x128xf32> to vector<2x32xf32>
    %57 = math.tanh %56 : vector<2x32xf32>
    %58 = vector.extract_strided_slice %43 {offsets = [0, 96], sizes = [2, 32], strides = [1, 1]} : vector<2x128xf32> to vector<2x32xf32>
    %59 = arith.negf %58 : vector<2x32xf32>
    %60 = math.exp %59 : vector<2x32xf32>
    %cst_18 = arith.constant 1.000000e+00 : f32
    %61 = vector.broadcast %cst_18 : f32 to vector<2x32xf32>
    %62 = arith.addf %61, %60 : vector<2x32xf32>
    %63 = arith.divf %61, %62 : vector<2x32xf32>
    %64 = arith.mulf %55, %36 : vector<2x32xf32>
    %65 = arith.mulf %49, %57 : vector<2x32xf32>
    %66 = arith.addf %64, %65 : vector<2x32xf32>
    %67 = math.tanh %66 : vector<2x32xf32>
    %68 = arith.mulf %63, %67 : vector<2x32xf32>
    %c2 = arith.constant 2 : index
    %c0_19 = arith.constant 0 : index
    %69 = vector.load %arg10[%c2, %c0_19] : memref<16x32xf32, #tpu.memory_space<vmem>>, vector<2x32xf32>
    tpu.vector_store %arg10[%c2, %c0_19], %68 {strides = array<i32>} : memref<16x32xf32, #tpu.memory_space<vmem>>, vector<2x32xf32>,
    %70 = vector.extract_strided_slice %7 {offsets = [4, 0], sizes = [2, 128], strides = [1, 1]} : vector<16x128xf32> to vector<2x128xf32>
    %71 = arith.truncf %68 : vector<2x32xf32> to vector<2x32xbf16>
    %cst_20 = arith.constant dense<0.000000e+00> : vector<2x128xf32>
    %72 = tpu.matmul %71, %3, %cst_20 {dimension_numbers = #tpu.dot_dimension_numbers<[1], [0], [0], [1], [0, 0, 1, 1], [], []>} : vector<2x32xbf16>, vector<32x128xbf16>, vector<2x128xf32> -> vector<2x128xf32>
    %73 = arith.addf %70, %72 : vector<2x128xf32>
    %74 = vector.extract_strided_slice %73 {offsets = [0, 0], sizes = [2, 32], strides = [1, 1]} : vector<2x128xf32> to vector<2x32xf32>
    %75 = arith.negf %74 : vector<2x32xf32>
    %76 = math.exp %75 : vector<2x32xf32>
    %cst_21 = arith.constant 1.000000e+00 : f32
    %77 = vector.broadcast %cst_21 : f32 to vector<2x32xf32>
    %78 = arith.addf %77, %76 : vector<2x32xf32>
    %79 = arith.divf %77, %78 : vector<2x32xf32>
    %80 = vector.extract_strided_slice %73 {offsets = [0, 32], sizes = [2, 32], strides = [1, 1]} : vector<2x128xf32> to vector<2x32xf32>
    %81 = arith.negf %80 : vector<2x32xf32>
    %82 = math.exp %81 : vector<2x32xf32>
    %cst_22 = arith.constant 1.000000e+00 : f32
    %83 = vector.broadcast %cst_22 : f32 to vector<2x32xf32>
    %84 = arith.addf %83, %82 : vector<2x32xf32>
    %85 = arith.divf %83, %84 : vector<2x32xf32>
    %86 = vector.extract_strided_slice %73 {offsets = [0, 64], sizes = [2, 32], strides = [1, 1]} : vector<2x128xf32> to vector<2x32xf32>
    %87 = math.tanh %86 : vector<2x32xf32>
    %88 = vector.extract_strided_slice %73 {offsets = [0, 96], sizes = [2, 32], strides = [1, 1]} : vector<2x128xf32> to vector<2x32xf32>
    %89 = arith.negf %88 : vector<2x32xf32>
    %90 = math.exp %89 : vector<2x32xf32>
    %cst_23 = arith.constant 1.000000e+00 : f32
    %91 = vector.broadcast %cst_23 : f32 to vector<2x32xf32>
    %92 = arith.addf %91, %90 : vector<2x32xf32>
    %93 = arith.divf %91, %92 : vector<2x32xf32>
    %94 = arith.mulf %85, %66 : vector<2x32xf32>
    %95 = arith.mulf %79, %87 : vector<2x32xf32>
    %96 = arith.addf %94, %95 : vector<2x32xf32>
    %97 = math.tanh %96 : vector<2x32xf32>
    %98 = arith.mulf %93, %97 : vector<2x32xf32>
    %c4 = arith.constant 4 : index
    %c0_24 = arith.constant 0 : index
    %99 = vector.load %arg10[%c4, %c0_24] : memref<16x32xf32, #tpu.memory_space<vmem>>, vector<2x32xf32>
    tpu.vector_store %arg10[%c4, %c0_24], %98 {strides = array<i32>} : memref<16x32xf32, #tpu.memory_space<vmem>>, vector<2x32xf32>,
    %100 = vector.extract_strided_slice %7 {offsets = [6, 0], sizes = [2, 128], strides = [1, 1]} : vector<16x128xf32> to vector<2x128xf32>
    %101 = arith.truncf %98 : vector<2x32xf32> to vector<2x32xbf16>
    %cst_25 = arith.constant dense<0.000000e+00> : vector<2x128xf32>
    %102 = tpu.matmul %101, %3, %cst_25 {dimension_numbers = #tpu.dot_dimension_numbers<[1], [0], [0], [1], [0, 0, 1, 1], [], []>} : vector<2x32xbf16>, vector<32x128xbf16>, vector<2x128xf32> -> vector<2x128xf32>
    %103 = arith.addf %100, %102 : vector<2x128xf32>
    %104 = vector.extract_strided_slice %103 {offsets = [0, 0], sizes = [2, 32], strides = [1, 1]} : vector<2x128xf32> to vector<2x32xf32>
    %105 = arith.negf %104 : vector<2x32xf32>
    %106 = math.exp %105 : vector<2x32xf32>
    %cst_26 = arith.constant 1.000000e+00 : f32
    %107 = vector.broadcast %cst_26 : f32 to vector<2x32xf32>
    %108 = arith.addf %107, %106 : vector<2x32xf32>
    %109 = arith.divf %107, %108 : vector<2x32xf32>
    %110 = vector.extract_strided_slice %103 {offsets = [0, 32], sizes = [2, 32], strides = [1, 1]} : vector<2x128xf32> to vector<2x32xf32>
    %111 = arith.negf %110 : vector<2x32xf32>
    %112 = math.exp %111 : vector<2x32xf32>
    %cst_27 = arith.constant 1.000000e+00 : f32
    %113 = vector.broadcast %cst_27 : f32 to vector<2x32xf32>
    %114 = arith.addf %113, %112 : vector<2x32xf32>
    %115 = arith.divf %113, %114 : vector<2x32xf32>
    %116 = vector.extract_strided_slice %103 {offsets = [0, 64], sizes = [2, 32], strides = [1, 1]} : vector<2x128xf32> to vector<2x32xf32>
    %117 = math.tanh %116 : vector<2x32xf32>
    %118 = vector.extract_strided_slice %103 {offsets = [0, 96], sizes = [2, 32], strides = [1, 1]} : vector<2x128xf32> to vector<2x32xf32>
    %119 = arith.negf %118 : vector<2x32xf32>
    %120 = math.exp %119 : vector<2x32xf32>
    %cst_28 = arith.constant 1.000000e+00 : f32
    %121 = vector.broadcast %cst_28 : f32 to vector<2x32xf32>
    %122 = arith.addf %121, %120 : vector<2x32xf32>
    %123 = arith.divf %121, %122 : vector<2x32xf32>
    %124 = arith.mulf %115, %96 : vector<2x32xf32>
    %125 = arith.mulf %109, %117 : vector<2x32xf32>
    %126 = arith.addf %124, %125 : vector<2x32xf32>
    %127 = math.tanh %126 : vector<2x32xf32>
    %128 = arith.mulf %123, %127 : vector<2x32xf32>
    %c6 = arith.constant 6 : index
    %c0_29 = arith.constant 0 : index
    %129 = vector.load %arg10[%c6, %c0_29] : memref<16x32xf32, #tpu.memory_space<vmem>>, vector<2x32xf32>
    tpu.vector_store %arg10[%c6, %c0_29], %128 {strides = array<i32>} : memref<16x32xf32, #tpu.memory_space<vmem>>, vector<2x32xf32>,
    %130 = vector.extract_strided_slice %7 {offsets = [8, 0], sizes = [2, 128], strides = [1, 1]} : vector<16x128xf32> to vector<2x128xf32>
    %131 = arith.truncf %128 : vector<2x32xf32> to vector<2x32xbf16>
    %cst_30 = arith.constant dense<0.000000e+00> : vector<2x128xf32>
    %132 = tpu.matmul %131, %3, %cst_30 {dimension_numbers = #tpu.dot_dimension_numbers<[1], [0], [0], [1], [0, 0, 1, 1], [], []>} : vector<2x32xbf16>, vector<32x128xbf16>, vector<2x128xf32> -> vector<2x128xf32>
    %133 = arith.addf %130, %132 : vector<2x128xf32>
    %134 = vector.extract_strided_slice %133 {offsets = [0, 0], sizes = [2, 32], strides = [1, 1]} : vector<2x128xf32> to vector<2x32xf32>
    %135 = arith.negf %134 : vector<2x32xf32>
    %136 = math.exp %135 : vector<2x32xf32>
    %cst_31 = arith.constant 1.000000e+00 : f32
    %137 = vector.broadcast %cst_31 : f32 to vector<2x32xf32>
    %138 = arith.addf %137, %136 : vector<2x32xf32>
    %139 = arith.divf %137, %138 : vector<2x32xf32>
    %140 = vector.extract_strided_slice %133 {offsets = [0, 32], sizes = [2, 32], strides = [1, 1]} : vector<2x128xf32> to vector<2x32xf32>
    %141 = arith.negf %140 : vector<2x32xf32>
    %142 = math.exp %141 : vector<2x32xf32>
    %cst_32 = arith.constant 1.000000e+00 : f32
    %143 = vector.broadcast %cst_32 : f32 to vector<2x32xf32>
    %144 = arith.addf %143, %142 : vector<2x32xf32>
    %145 = arith.divf %143, %144 : vector<2x32xf32>
    %146 = vector.extract_strided_slice %133 {offsets = [0, 64], sizes = [2, 32], strides = [1, 1]} : vector<2x128xf32> to vector<2x32xf32>
    %147 = math.tanh %146 : vector<2x32xf32>
    %148 = vector.extract_strided_slice %133 {offsets = [0, 96], sizes = [2, 32], strides = [1, 1]} : vector<2x128xf32> to vector<2x32xf32>
    %149 = arith.negf %148 : vector<2x32xf32>
    %150 = math.exp %149 : vector<2x32xf32>
    %cst_33 = arith.constant 1.000000e+00 : f32
    %151 = vector.broadcast %cst_33 : f32 to vector<2x32xf32>
    %152 = arith.addf %151, %150 : vector<2x32xf32>
    %153 = arith.divf %151, %152 : vector<2x32xf32>
    %154 = arith.mulf %145, %126 : vector<2x32xf32>
    %155 = arith.mulf %139, %147 : vector<2x32xf32>
    %156 = arith.addf %154, %155 : vector<2x32xf32>
    %157 = math.tanh %156 : vector<2x32xf32>
    %158 = arith.mulf %153, %157 : vector<2x32xf32>
    %c8 = arith.constant 8 : index
    %c0_34 = arith.constant 0 : index
    %159 = vector.load %arg10[%c8, %c0_34] : memref<16x32xf32, #tpu.memory_space<vmem>>, vector<2x32xf32>
    tpu.vector_store %arg10[%c8, %c0_34], %158 {strides = array<i32>} : memref<16x32xf32, #tpu.memory_space<vmem>>, vector<2x32xf32>,
    %160 = vector.extract_strided_slice %7 {offsets = [10, 0], sizes = [2, 128], strides = [1, 1]} : vector<16x128xf32> to vector<2x128xf32>
    %161 = arith.truncf %158 : vector<2x32xf32> to vector<2x32xbf16>
    %cst_35 = arith.constant dense<0.000000e+00> : vector<2x128xf32>
    %162 = tpu.matmul %161, %3, %cst_35 {dimension_numbers = #tpu.dot_dimension_numbers<[1], [0], [0], [1], [0, 0, 1, 1], [], []>} : vector<2x32xbf16>, vector<32x128xbf16>, vector<2x128xf32> -> vector<2x128xf32>
    %163 = arith.addf %160, %162 : vector<2x128xf32>
    %164 = vector.extract_strided_slice %163 {offsets = [0, 0], sizes = [2, 32], strides = [1, 1]} : vector<2x128xf32> to vector<2x32xf32>
    %165 = arith.negf %164 : vector<2x32xf32>
    %166 = math.exp %165 : vector<2x32xf32>
    %cst_36 = arith.constant 1.000000e+00 : f32
    %167 = vector.broadcast %cst_36 : f32 to vector<2x32xf32>
    %168 = arith.addf %167, %166 : vector<2x32xf32>
    %169 = arith.divf %167, %168 : vector<2x32xf32>
    %170 = vector.extract_strided_slice %163 {offsets = [0, 32], sizes = [2, 32], strides = [1, 1]} : vector<2x128xf32> to vector<2x32xf32>
    %171 = arith.negf %170 : vector<2x32xf32>
    %172 = math.exp %171 : vector<2x32xf32>
    %cst_37 = arith.constant 1.000000e+00 : f32
    %173 = vector.broadcast %cst_37 : f32 to vector<2x32xf32>
    %174 = arith.addf %173, %172 : vector<2x32xf32>
    %175 = arith.divf %173, %174 : vector<2x32xf32>
    %176 = vector.extract_strided_slice %163 {offsets = [0, 64], sizes = [2, 32], strides = [1, 1]} : vector<2x128xf32> to vector<2x32xf32>
    %177 = math.tanh %176 : vector<2x32xf32>
    %178 = vector.extract_strided_slice %163 {offsets = [0, 96], sizes = [2, 32], strides = [1, 1]} : vector<2x128xf32> to vector<2x32xf32>
    %179 = arith.negf %178 : vector<2x32xf32>
    %180 = math.exp %179 : vector<2x32xf32>
    %cst_38 = arith.constant 1.000000e+00 : f32
    %181 = vector.broadcast %cst_38 : f32 to vector<2x32xf32>
    %182 = arith.addf %181, %180 : vector<2x32xf32>
    %183 = arith.divf %181, %182 : vector<2x32xf32>
    %184 = arith.mulf %175, %156 : vector<2x32xf32>
    %185 = arith.mulf %169, %177 : vector<2x32xf32>
    %186 = arith.addf %184, %185 : vector<2x32xf32>
    %187 = math.tanh %186 : vector<2x32xf32>
    %188 = arith.mulf %183, %187 : vector<2x32xf32>
    %c10 = arith.constant 10 : index
    %c0_39 = arith.constant 0 : index
    %189 = vector.load %arg10[%c10, %c0_39] : memref<16x32xf32, #tpu.memory_space<vmem>>, vector<2x32xf32>
    tpu.vector_store %arg10[%c10, %c0_39], %188 {strides = array<i32>} : memref<16x32xf32, #tpu.memory_space<vmem>>, vector<2x32xf32>,
    %190 = vector.extract_strided_slice %7 {offsets = [12, 0], sizes = [2, 128], strides = [1, 1]} : vector<16x128xf32> to vector<2x128xf32>
    %191 = arith.truncf %188 : vector<2x32xf32> to vector<2x32xbf16>
    %cst_40 = arith.constant dense<0.000000e+00> : vector<2x128xf32>
    %192 = tpu.matmul %191, %3, %cst_40 {dimension_numbers = #tpu.dot_dimension_numbers<[1], [0], [0], [1], [0, 0, 1, 1], [], []>} : vector<2x32xbf16>, vector<32x128xbf16>, vector<2x128xf32> -> vector<2x128xf32>
    %193 = arith.addf %190, %192 : vector<2x128xf32>
    %194 = vector.extract_strided_slice %193 {offsets = [0, 0], sizes = [2, 32], strides = [1, 1]} : vector<2x128xf32> to vector<2x32xf32>
    %195 = arith.negf %194 : vector<2x32xf32>
    %196 = math.exp %195 : vector<2x32xf32>
    %cst_41 = arith.constant 1.000000e+00 : f32
    %197 = vector.broadcast %cst_41 : f32 to vector<2x32xf32>
    %198 = arith.addf %197, %196 : vector<2x32xf32>
    %199 = arith.divf %197, %198 : vector<2x32xf32>
    %200 = vector.extract_strided_slice %193 {offsets = [0, 32], sizes = [2, 32], strides = [1, 1]} : vector<2x128xf32> to vector<2x32xf32>
    %201 = arith.negf %200 : vector<2x32xf32>
    %202 = math.exp %201 : vector<2x32xf32>
    %cst_42 = arith.constant 1.000000e+00 : f32
    %203 = vector.broadcast %cst_42 : f32 to vector<2x32xf32>
    %204 = arith.addf %203, %202 : vector<2x32xf32>
    %205 = arith.divf %203, %204 : vector<2x32xf32>
    %206 = vector.extract_strided_slice %193 {offsets = [0, 64], sizes = [2, 32], strides = [1, 1]} : vector<2x128xf32> to vector<2x32xf32>
    %207 = math.tanh %206 : vector<2x32xf32>
    %208 = vector.extract_strided_slice %193 {offsets = [0, 96], sizes = [2, 32], strides = [1, 1]} : vector<2x128xf32> to vector<2x32xf32>
    %209 = arith.negf %208 : vector<2x32xf32>
    %210 = math.exp %209 : vector<2x32xf32>
    %cst_43 = arith.constant 1.000000e+00 : f32
    %211 = vector.broadcast %cst_43 : f32 to vector<2x32xf32>
    %212 = arith.addf %211, %210 : vector<2x32xf32>
    %213 = arith.divf %211, %212 : vector<2x32xf32>
    %214 = arith.mulf %205, %186 : vector<2x32xf32>
    %215 = arith.mulf %199, %207 : vector<2x32xf32>
    %216 = arith.addf %214, %215 : vector<2x32xf32>
    %217 = math.tanh %216 : vector<2x32xf32>
    %218 = arith.mulf %213, %217 : vector<2x32xf32>
    %c12 = arith.constant 12 : index
    %c0_44 = arith.constant 0 : index
    %219 = vector.load %arg10[%c12, %c0_44] : memref<16x32xf32, #tpu.memory_space<vmem>>, vector<2x32xf32>
    tpu.vector_store %arg10[%c12, %c0_44], %218 {strides = array<i32>} : memref<16x32xf32, #tpu.memory_space<vmem>>, vector<2x32xf32>,
    %220 = vector.extract_strided_slice %7 {offsets = [14, 0], sizes = [2, 128], strides = [1, 1]} : vector<16x128xf32> to vector<2x128xf32>
    %221 = arith.truncf %218 : vector<2x32xf32> to vector<2x32xbf16>
    %cst_45 = arith.constant dense<0.000000e+00> : vector<2x128xf32>
    %222 = tpu.matmul %221, %3, %cst_45 {dimension_numbers = #tpu.dot_dimension_numbers<[1], [0], [0], [1], [0, 0, 1, 1], [], []>} : vector<2x32xbf16>, vector<32x128xbf16>, vector<2x128xf32> -> vector<2x128xf32>
    %223 = arith.addf %220, %222 : vector<2x128xf32>
    %224 = vector.extract_strided_slice %223 {offsets = [0, 0], sizes = [2, 32], strides = [1, 1]} : vector<2x128xf32> to vector<2x32xf32>
    %225 = arith.negf %224 : vector<2x32xf32>
    %226 = math.exp %225 : vector<2x32xf32>
    %cst_46 = arith.constant 1.000000e+00 : f32
    %227 = vector.broadcast %cst_46 : f32 to vector<2x32xf32>
    %228 = arith.addf %227, %226 : vector<2x32xf32>
    %229 = arith.divf %227, %228 : vector<2x32xf32>
    %230 = vector.extract_strided_slice %223 {offsets = [0, 32], sizes = [2, 32], strides = [1, 1]} : vector<2x128xf32> to vector<2x32xf32>
    %231 = arith.negf %230 : vector<2x32xf32>
    %232 = math.exp %231 : vector<2x32xf32>
    %cst_47 = arith.constant 1.000000e+00 : f32
    %233 = vector.broadcast %cst_47 : f32 to vector<2x32xf32>
    %234 = arith.addf %233, %232 : vector<2x32xf32>
    %235 = arith.divf %233, %234 : vector<2x32xf32>
    %236 = vector.extract_strided_slice %223 {offsets = [0, 64], sizes = [2, 32], strides = [1, 1]} : vector<2x128xf32> to vector<2x32xf32>
    %237 = math.tanh %236 : vector<2x32xf32>
    %238 = vector.extract_strided_slice %223 {offsets = [0, 96], sizes = [2, 32], strides = [1, 1]} : vector<2x128xf32> to vector<2x32xf32>
    %239 = arith.negf %238 : vector<2x32xf32>
    %240 = math.exp %239 : vector<2x32xf32>
    %cst_48 = arith.constant 1.000000e+00 : f32
    %241 = vector.broadcast %cst_48 : f32 to vector<2x32xf32>
    %242 = arith.addf %241, %240 : vector<2x32xf32>
    %243 = arith.divf %241, %242 : vector<2x32xf32>
    %244 = arith.mulf %235, %216 : vector<2x32xf32>
    %245 = arith.mulf %229, %237 : vector<2x32xf32>
    %246 = arith.addf %244, %245 : vector<2x32xf32>
    %247 = math.tanh %246 : vector<2x32xf32>
    %248 = arith.mulf %243, %247 : vector<2x32xf32>
    %c14 = arith.constant 14 : index
    %c0_49 = arith.constant 0 : index
    %249 = vector.load %arg10[%c14, %c0_49] : memref<16x32xf32, #tpu.memory_space<vmem>>, vector<2x32xf32>
    tpu.vector_store %arg10[%c14, %c0_49], %248 {strides = array<i32>} : memref<16x32xf32, #tpu.memory_space<vmem>>, vector<2x32xf32>,
    %c0_50 = arith.constant 0 : index
    %c0_51 = arith.constant 0 : index
    %250 = vector.load %arg10[%c0_50, %c0_51] : memref<16x32xf32, #tpu.memory_space<vmem>>, vector<16x32xf32>
    %251 = arith.truncf %250 : vector<16x32xf32> to vector<16x32xbf16>
    %c0_52 = arith.constant 0 : index
    %c0_53 = arith.constant 0 : index
    %252 = vector.load %arg4[%c0_52, %c0_53] : memref<32x128xbf16, #tpu.memory_space<vmem>>, vector<32x128xbf16>
    %c0_54 = arith.constant 0 : index
    %c0_55 = arith.constant 0 : index
    %253 = vector.load %arg5[%c0_54, %c0_55] : memref<32x128xbf16, #tpu.memory_space<vmem>>, vector<32x128xbf16>
    %c0_56 = arith.constant 0 : index
    %c0_57 = arith.constant 0 : index
    %254 = vector.load %arg6[%c0_56, %c0_57] : memref<1x128xf32, #tpu.memory_space<vmem>>, vector<1x128xf32>
    %cst_58 = arith.constant dense<0.000000e+00> : vector<16x128xf32>
    %255 = tpu.matmul %251, %252, %cst_58 {dimension_numbers = #tpu.dot_dimension_numbers<[1], [0], [0], [1], [0, 0, 1, 1], [], []>} : vector<16x32xbf16>, vector<32x128xbf16>, vector<16x128xf32> -> vector<16x128xf32>
    %256 = vector.broadcast %254 : vector<1x128xf32> to vector<16x128xf32>
    %257 = arith.addf %255, %256 : vector<16x128xf32>
    %cst_59 = arith.constant 0.000000e+00 : f32
    %258 = vector.broadcast %cst_59 : f32 to vector<2x32xf32>
    %cst_60 = arith.constant 0.000000e+00 : f32
    %259 = vector.broadcast %cst_60 : f32 to vector<2x32xf32>
    %260 = vector.extract_strided_slice %257 {offsets = [0, 0], sizes = [2, 128], strides = [1, 1]} : vector<16x128xf32> to vector<2x128xf32>
    %261 = arith.truncf %258 : vector<2x32xf32> to vector<2x32xbf16>
    %cst_61 = arith.constant dense<0.000000e+00> : vector<2x128xf32>
    %262 = tpu.matmul %261, %253, %cst_61 {dimension_numbers = #tpu.dot_dimension_numbers<[1], [0], [0], [1], [0, 0, 1, 1], [], []>} : vector<2x32xbf16>, vector<32x128xbf16>, vector<2x128xf32> -> vector<2x128xf32>
    %263 = arith.addf %260, %262 : vector<2x128xf32>
    %264 = vector.extract_strided_slice %263 {offsets = [0, 0], sizes = [2, 32], strides = [1, 1]} : vector<2x128xf32> to vector<2x32xf32>
    %265 = arith.negf %264 : vector<2x32xf32>
    %266 = math.exp %265 : vector<2x32xf32>
    %cst_62 = arith.constant 1.000000e+00 : f32
    %267 = vector.broadcast %cst_62 : f32 to vector<2x32xf32>
    %268 = arith.addf %267, %266 : vector<2x32xf32>
    %269 = arith.divf %267, %268 : vector<2x32xf32>
    %270 = vector.extract_strided_slice %263 {offsets = [0, 32], sizes = [2, 32], strides = [1, 1]} : vector<2x128xf32> to vector<2x32xf32>
    %271 = arith.negf %270 : vector<2x32xf32>
    %272 = math.exp %271 : vector<2x32xf32>
    %cst_63 = arith.constant 1.000000e+00 : f32
    %273 = vector.broadcast %cst_63 : f32 to vector<2x32xf32>
    %274 = arith.addf %273, %272 : vector<2x32xf32>
    %275 = arith.divf %273, %274 : vector<2x32xf32>
    %276 = vector.extract_strided_slice %263 {offsets = [0, 64], sizes = [2, 32], strides = [1, 1]} : vector<2x128xf32> to vector<2x32xf32>
    %277 = math.tanh %276 : vector<2x32xf32>
    %278 = vector.extract_strided_slice %263 {offsets = [0, 96], sizes = [2, 32], strides = [1, 1]} : vector<2x128xf32> to vector<2x32xf32>
    %279 = arith.negf %278 : vector<2x32xf32>
    %280 = math.exp %279 : vector<2x32xf32>
    %cst_64 = arith.constant 1.000000e+00 : f32
    %281 = vector.broadcast %cst_64 : f32 to vector<2x32xf32>
    %282 = arith.addf %281, %280 : vector<2x32xf32>
    %283 = arith.divf %281, %282 : vector<2x32xf32>
    %284 = arith.mulf %275, %259 : vector<2x32xf32>
    %285 = arith.mulf %269, %277 : vector<2x32xf32>
    %286 = arith.addf %284, %285 : vector<2x32xf32>
    %287 = math.tanh %286 : vector<2x32xf32>
    %288 = arith.mulf %283, %287 : vector<2x32xf32>
    %c0_65 = arith.constant 0 : index
    %c0_66 = arith.constant 0 : index
    %289 = vector.load %arg10[%c0_65, %c0_66] : memref<16x32xf32, #tpu.memory_space<vmem>>, vector<2x32xf32>
    tpu.vector_store %arg10[%c0_65, %c0_66], %288 {strides = array<i32>} : memref<16x32xf32, #tpu.memory_space<vmem>>, vector<2x32xf32>,
    %290 = vector.extract_strided_slice %257 {offsets = [2, 0], sizes = [2, 128], strides = [1, 1]} : vector<16x128xf32> to vector<2x128xf32>
    %291 = arith.truncf %288 : vector<2x32xf32> to vector<2x32xbf16>
    %cst_67 = arith.constant dense<0.000000e+00> : vector<2x128xf32>
    %292 = tpu.matmul %291, %253, %cst_67 {dimension_numbers = #tpu.dot_dimension_numbers<[1], [0], [0], [1], [0, 0, 1, 1], [], []>} : vector<2x32xbf16>, vector<32x128xbf16>, vector<2x128xf32> -> vector<2x128xf32>
    %293 = arith.addf %290, %292 : vector<2x128xf32>
    %294 = vector.extract_strided_slice %293 {offsets = [0, 0], sizes = [2, 32], strides = [1, 1]} : vector<2x128xf32> to vector<2x32xf32>
    %295 = arith.negf %294 : vector<2x32xf32>
    %296 = math.exp %295 : vector<2x32xf32>
    %cst_68 = arith.constant 1.000000e+00 : f32
    %297 = vector.broadcast %cst_68 : f32 to vector<2x32xf32>
    %298 = arith.addf %297, %296 : vector<2x32xf32>
    %299 = arith.divf %297, %298 : vector<2x32xf32>
    %300 = vector.extract_strided_slice %293 {offsets = [0, 32], sizes = [2, 32], strides = [1, 1]} : vector<2x128xf32> to vector<2x32xf32>
    %301 = arith.negf %300 : vector<2x32xf32>
    %302 = math.exp %301 : vector<2x32xf32>
    %cst_69 = arith.constant 1.000000e+00 : f32
    %303 = vector.broadcast %cst_69 : f32 to vector<2x32xf32>
    %304 = arith.addf %303, %302 : vector<2x32xf32>
    %305 = arith.divf %303, %304 : vector<2x32xf32>
    %306 = vector.extract_strided_slice %293 {offsets = [0, 64], sizes = [2, 32], strides = [1, 1]} : vector<2x128xf32> to vector<2x32xf32>
    %307 = math.tanh %306 : vector<2x32xf32>
    %308 = vector.extract_strided_slice %293 {offsets = [0, 96], sizes = [2, 32], strides = [1, 1]} : vector<2x128xf32> to vector<2x32xf32>
    %309 = arith.negf %308 : vector<2x32xf32>
    %310 = math.exp %309 : vector<2x32xf32>
    %cst_70 = arith.constant 1.000000e+00 : f32
    %311 = vector.broadcast %cst_70 : f32 to vector<2x32xf32>
    %312 = arith.addf %311, %310 : vector<2x32xf32>
    %313 = arith.divf %311, %312 : vector<2x32xf32>
    %314 = arith.mulf %305, %286 : vector<2x32xf32>
    %315 = arith.mulf %299, %307 : vector<2x32xf32>
    %316 = arith.addf %314, %315 : vector<2x32xf32>
    %317 = math.tanh %316 : vector<2x32xf32>
    %318 = arith.mulf %313, %317 : vector<2x32xf32>
    %c2_71 = arith.constant 2 : index
    %c0_72 = arith.constant 0 : index
    %319 = vector.load %arg10[%c2_71, %c0_72] : memref<16x32xf32, #tpu.memory_space<vmem>>, vector<2x32xf32>
    tpu.vector_store %arg10[%c2_71, %c0_72], %318 {strides = array<i32>} : memref<16x32xf32, #tpu.memory_space<vmem>>, vector<2x32xf32>,
    %320 = vector.extract_strided_slice %257 {offsets = [4, 0], sizes = [2, 128], strides = [1, 1]} : vector<16x128xf32> to vector<2x128xf32>
    %321 = arith.truncf %318 : vector<2x32xf32> to vector<2x32xbf16>
    %cst_73 = arith.constant dense<0.000000e+00> : vector<2x128xf32>
    %322 = tpu.matmul %321, %253, %cst_73 {dimension_numbers = #tpu.dot_dimension_numbers<[1], [0], [0], [1], [0, 0, 1, 1], [], []>} : vector<2x32xbf16>, vector<32x128xbf16>, vector<2x128xf32> -> vector<2x128xf32>
    %323 = arith.addf %320, %322 : vector<2x128xf32>
    %324 = vector.extract_strided_slice %323 {offsets = [0, 0], sizes = [2, 32], strides = [1, 1]} : vector<2x128xf32> to vector<2x32xf32>
    %325 = arith.negf %324 : vector<2x32xf32>
    %326 = math.exp %325 : vector<2x32xf32>
    %cst_74 = arith.constant 1.000000e+00 : f32
    %327 = vector.broadcast %cst_74 : f32 to vector<2x32xf32>
    %328 = arith.addf %327, %326 : vector<2x32xf32>
    %329 = arith.divf %327, %328 : vector<2x32xf32>
    %330 = vector.extract_strided_slice %323 {offsets = [0, 32], sizes = [2, 32], strides = [1, 1]} : vector<2x128xf32> to vector<2x32xf32>
    %331 = arith.negf %330 : vector<2x32xf32>
    %332 = math.exp %331 : vector<2x32xf32>
    %cst_75 = arith.constant 1.000000e+00 : f32
    %333 = vector.broadcast %cst_75 : f32 to vector<2x32xf32>
    %334 = arith.addf %333, %332 : vector<2x32xf32>
    %335 = arith.divf %333, %334 : vector<2x32xf32>
    %336 = vector.extract_strided_slice %323 {offsets = [0, 64], sizes = [2, 32], strides = [1, 1]} : vector<2x128xf32> to vector<2x32xf32>
    %337 = math.tanh %336 : vector<2x32xf32>
    %338 = vector.extract_strided_slice %323 {offsets = [0, 96], sizes = [2, 32], strides = [1, 1]} : vector<2x128xf32> to vector<2x32xf32>
    %339 = arith.negf %338 : vector<2x32xf32>
    %340 = math.exp %339 : vector<2x32xf32>
    %cst_76 = arith.constant 1.000000e+00 : f32
    %341 = vector.broadcast %cst_76 : f32 to vector<2x32xf32>
    %342 = arith.addf %341, %340 : vector<2x32xf32>
    %343 = arith.divf %341, %342 : vector<2x32xf32>
    %344 = arith.mulf %335, %316 : vector<2x32xf32>
    %345 = arith.mulf %329, %337 : vector<2x32xf32>
    %346 = arith.addf %344, %345 : vector<2x32xf32>
    %347 = math.tanh %346 : vector<2x32xf32>
    %348 = arith.mulf %343, %347 : vector<2x32xf32>
    %c4_77 = arith.constant 4 : index
    %c0_78 = arith.constant 0 : index
    %349 = vector.load %arg10[%c4_77, %c0_78] : memref<16x32xf32, #tpu.memory_space<vmem>>, vector<2x32xf32>
    tpu.vector_store %arg10[%c4_77, %c0_78], %348 {strides = array<i32>} : memref<16x32xf32, #tpu.memory_space<vmem>>, vector<2x32xf32>,
    %350 = vector.extract_strided_slice %257 {offsets = [6, 0], sizes = [2, 128], strides = [1, 1]} : vector<16x128xf32> to vector<2x128xf32>
    %351 = arith.truncf %348 : vector<2x32xf32> to vector<2x32xbf16>
    %cst_79 = arith.constant dense<0.000000e+00> : vector<2x128xf32>
    %352 = tpu.matmul %351, %253, %cst_79 {dimension_numbers = #tpu.dot_dimension_numbers<[1], [0], [0], [1], [0, 0, 1, 1], [], []>} : vector<2x32xbf16>, vector<32x128xbf16>, vector<2x128xf32> -> vector<2x128xf32>
    %353 = arith.addf %350, %352 : vector<2x128xf32>
    %354 = vector.extract_strided_slice %353 {offsets = [0, 0], sizes = [2, 32], strides = [1, 1]} : vector<2x128xf32> to vector<2x32xf32>
    %355 = arith.negf %354 : vector<2x32xf32>
    %356 = math.exp %355 : vector<2x32xf32>
    %cst_80 = arith.constant 1.000000e+00 : f32
    %357 = vector.broadcast %cst_80 : f32 to vector<2x32xf32>
    %358 = arith.addf %357, %356 : vector<2x32xf32>
    %359 = arith.divf %357, %358 : vector<2x32xf32>
    %360 = vector.extract_strided_slice %353 {offsets = [0, 32], sizes = [2, 32], strides = [1, 1]} : vector<2x128xf32> to vector<2x32xf32>
    %361 = arith.negf %360 : vector<2x32xf32>
    %362 = math.exp %361 : vector<2x32xf32>
    %cst_81 = arith.constant 1.000000e+00 : f32
    %363 = vector.broadcast %cst_81 : f32 to vector<2x32xf32>
    %364 = arith.addf %363, %362 : vector<2x32xf32>
    %365 = arith.divf %363, %364 : vector<2x32xf32>
    %366 = vector.extract_strided_slice %353 {offsets = [0, 64], sizes = [2, 32], strides = [1, 1]} : vector<2x128xf32> to vector<2x32xf32>
    %367 = math.tanh %366 : vector<2x32xf32>
    %368 = vector.extract_strided_slice %353 {offsets = [0, 96], sizes = [2, 32], strides = [1, 1]} : vector<2x128xf32> to vector<2x32xf32>
    %369 = arith.negf %368 : vector<2x32xf32>
    %370 = math.exp %369 : vector<2x32xf32>
    %cst_82 = arith.constant 1.000000e+00 : f32
    %371 = vector.broadcast %cst_82 : f32 to vector<2x32xf32>
    %372 = arith.addf %371, %370 : vector<2x32xf32>
    %373 = arith.divf %371, %372 : vector<2x32xf32>
    %374 = arith.mulf %365, %346 : vector<2x32xf32>
    %375 = arith.mulf %359, %367 : vector<2x32xf32>
    %376 = arith.addf %374, %375 : vector<2x32xf32>
    %377 = math.tanh %376 : vector<2x32xf32>
    %378 = arith.mulf %373, %377 : vector<2x32xf32>
    %c6_83 = arith.constant 6 : index
    %c0_84 = arith.constant 0 : index
    %379 = vector.load %arg10[%c6_83, %c0_84] : memref<16x32xf32, #tpu.memory_space<vmem>>, vector<2x32xf32>
    tpu.vector_store %arg10[%c6_83, %c0_84], %378 {strides = array<i32>} : memref<16x32xf32, #tpu.memory_space<vmem>>, vector<2x32xf32>,
    %380 = vector.extract_strided_slice %257 {offsets = [8, 0], sizes = [2, 128], strides = [1, 1]} : vector<16x128xf32> to vector<2x128xf32>
    %381 = arith.truncf %378 : vector<2x32xf32> to vector<2x32xbf16>
    %cst_85 = arith.constant dense<0.000000e+00> : vector<2x128xf32>
    %382 = tpu.matmul %381, %253, %cst_85 {dimension_numbers = #tpu.dot_dimension_numbers<[1], [0], [0], [1], [0, 0, 1, 1], [], []>} : vector<2x32xbf16>, vector<32x128xbf16>, vector<2x128xf32> -> vector<2x128xf32>
    %383 = arith.addf %380, %382 : vector<2x128xf32>
    %384 = vector.extract_strided_slice %383 {offsets = [0, 0], sizes = [2, 32], strides = [1, 1]} : vector<2x128xf32> to vector<2x32xf32>
    %385 = arith.negf %384 : vector<2x32xf32>
    %386 = math.exp %385 : vector<2x32xf32>
    %cst_86 = arith.constant 1.000000e+00 : f32
    %387 = vector.broadcast %cst_86 : f32 to vector<2x32xf32>
    %388 = arith.addf %387, %386 : vector<2x32xf32>
    %389 = arith.divf %387, %388 : vector<2x32xf32>
    %390 = vector.extract_strided_slice %383 {offsets = [0, 32], sizes = [2, 32], strides = [1, 1]} : vector<2x128xf32> to vector<2x32xf32>
    %391 = arith.negf %390 : vector<2x32xf32>
    %392 = math.exp %391 : vector<2x32xf32>
    %cst_87 = arith.constant 1.000000e+00 : f32
    %393 = vector.broadcast %cst_87 : f32 to vector<2x32xf32>
    %394 = arith.addf %393, %392 : vector<2x32xf32>
    %395 = arith.divf %393, %394 : vector<2x32xf32>
    %396 = vector.extract_strided_slice %383 {offsets = [0, 64], sizes = [2, 32], strides = [1, 1]} : vector<2x128xf32> to vector<2x32xf32>
    %397 = math.tanh %396 : vector<2x32xf32>
    %398 = vector.extract_strided_slice %383 {offsets = [0, 96], sizes = [2, 32], strides = [1, 1]} : vector<2x128xf32> to vector<2x32xf32>
    %399 = arith.negf %398 : vector<2x32xf32>
    %400 = math.exp %399 : vector<2x32xf32>
    %cst_88 = arith.constant 1.000000e+00 : f32
    %401 = vector.broadcast %cst_88 : f32 to vector<2x32xf32>
    %402 = arith.addf %401, %400 : vector<2x32xf32>
    %403 = arith.divf %401, %402 : vector<2x32xf32>
    %404 = arith.mulf %395, %376 : vector<2x32xf32>
    %405 = arith.mulf %389, %397 : vector<2x32xf32>
    %406 = arith.addf %404, %405 : vector<2x32xf32>
    %407 = math.tanh %406 : vector<2x32xf32>
    %408 = arith.mulf %403, %407 : vector<2x32xf32>
    %c8_89 = arith.constant 8 : index
    %c0_90 = arith.constant 0 : index
    %409 = vector.load %arg10[%c8_89, %c0_90] : memref<16x32xf32, #tpu.memory_space<vmem>>, vector<2x32xf32>
    tpu.vector_store %arg10[%c8_89, %c0_90], %408 {strides = array<i32>} : memref<16x32xf32, #tpu.memory_space<vmem>>, vector<2x32xf32>,
    %410 = vector.extract_strided_slice %257 {offsets = [10, 0], sizes = [2, 128], strides = [1, 1]} : vector<16x128xf32> to vector<2x128xf32>
    %411 = arith.truncf %408 : vector<2x32xf32> to vector<2x32xbf16>
    %cst_91 = arith.constant dense<0.000000e+00> : vector<2x128xf32>
    %412 = tpu.matmul %411, %253, %cst_91 {dimension_numbers = #tpu.dot_dimension_numbers<[1], [0], [0], [1], [0, 0, 1, 1], [], []>} : vector<2x32xbf16>, vector<32x128xbf16>, vector<2x128xf32> -> vector<2x128xf32>
    %413 = arith.addf %410, %412 : vector<2x128xf32>
    %414 = vector.extract_strided_slice %413 {offsets = [0, 0], sizes = [2, 32], strides = [1, 1]} : vector<2x128xf32> to vector<2x32xf32>
    %415 = arith.negf %414 : vector<2x32xf32>
    %416 = math.exp %415 : vector<2x32xf32>
    %cst_92 = arith.constant 1.000000e+00 : f32
    %417 = vector.broadcast %cst_92 : f32 to vector<2x32xf32>
    %418 = arith.addf %417, %416 : vector<2x32xf32>
    %419 = arith.divf %417, %418 : vector<2x32xf32>
    %420 = vector.extract_strided_slice %413 {offsets = [0, 32], sizes = [2, 32], strides = [1, 1]} : vector<2x128xf32> to vector<2x32xf32>
    %421 = arith.negf %420 : vector<2x32xf32>
    %422 = math.exp %421 : vector<2x32xf32>
    %cst_93 = arith.constant 1.000000e+00 : f32
    %423 = vector.broadcast %cst_93 : f32 to vector<2x32xf32>
    %424 = arith.addf %423, %422 : vector<2x32xf32>
    %425 = arith.divf %423, %424 : vector<2x32xf32>
    %426 = vector.extract_strided_slice %413 {offsets = [0, 64], sizes = [2, 32], strides = [1, 1]} : vector<2x128xf32> to vector<2x32xf32>
    %427 = math.tanh %426 : vector<2x32xf32>
    %428 = vector.extract_strided_slice %413 {offsets = [0, 96], sizes = [2, 32], strides = [1, 1]} : vector<2x128xf32> to vector<2x32xf32>
    %429 = arith.negf %428 : vector<2x32xf32>
    %430 = math.exp %429 : vector<2x32xf32>
    %cst_94 = arith.constant 1.000000e+00 : f32
    %431 = vector.broadcast %cst_94 : f32 to vector<2x32xf32>
    %432 = arith.addf %431, %430 : vector<2x32xf32>
    %433 = arith.divf %431, %432 : vector<2x32xf32>
    %434 = arith.mulf %425, %406 : vector<2x32xf32>
    %435 = arith.mulf %419, %427 : vector<2x32xf32>
    %436 = arith.addf %434, %435 : vector<2x32xf32>
    %437 = math.tanh %436 : vector<2x32xf32>
    %438 = arith.mulf %433, %437 : vector<2x32xf32>
    %c10_95 = arith.constant 10 : index
    %c0_96 = arith.constant 0 : index
    %439 = vector.load %arg10[%c10_95, %c0_96] : memref<16x32xf32, #tpu.memory_space<vmem>>, vector<2x32xf32>
    tpu.vector_store %arg10[%c10_95, %c0_96], %438 {strides = array<i32>} : memref<16x32xf32, #tpu.memory_space<vmem>>, vector<2x32xf32>,
    %440 = vector.extract_strided_slice %257 {offsets = [12, 0], sizes = [2, 128], strides = [1, 1]} : vector<16x128xf32> to vector<2x128xf32>
    %441 = arith.truncf %438 : vector<2x32xf32> to vector<2x32xbf16>
    %cst_97 = arith.constant dense<0.000000e+00> : vector<2x128xf32>
    %442 = tpu.matmul %441, %253, %cst_97 {dimension_numbers = #tpu.dot_dimension_numbers<[1], [0], [0], [1], [0, 0, 1, 1], [], []>} : vector<2x32xbf16>, vector<32x128xbf16>, vector<2x128xf32> -> vector<2x128xf32>
    %443 = arith.addf %440, %442 : vector<2x128xf32>
    %444 = vector.extract_strided_slice %443 {offsets = [0, 0], sizes = [2, 32], strides = [1, 1]} : vector<2x128xf32> to vector<2x32xf32>
    %445 = arith.negf %444 : vector<2x32xf32>
    %446 = math.exp %445 : vector<2x32xf32>
    %cst_98 = arith.constant 1.000000e+00 : f32
    %447 = vector.broadcast %cst_98 : f32 to vector<2x32xf32>
    %448 = arith.addf %447, %446 : vector<2x32xf32>
    %449 = arith.divf %447, %448 : vector<2x32xf32>
    %450 = vector.extract_strided_slice %443 {offsets = [0, 32], sizes = [2, 32], strides = [1, 1]} : vector<2x128xf32> to vector<2x32xf32>
    %451 = arith.negf %450 : vector<2x32xf32>
    %452 = math.exp %451 : vector<2x32xf32>
    %cst_99 = arith.constant 1.000000e+00 : f32
    %453 = vector.broadcast %cst_99 : f32 to vector<2x32xf32>
    %454 = arith.addf %453, %452 : vector<2x32xf32>
    %455 = arith.divf %453, %454 : vector<2x32xf32>
    %456 = vector.extract_strided_slice %443 {offsets = [0, 64], sizes = [2, 32], strides = [1, 1]} : vector<2x128xf32> to vector<2x32xf32>
    %457 = math.tanh %456 : vector<2x32xf32>
    %458 = vector.extract_strided_slice %443 {offsets = [0, 96], sizes = [2, 32], strides = [1, 1]} : vector<2x128xf32> to vector<2x32xf32>
    %459 = arith.negf %458 : vector<2x32xf32>
    %460 = math.exp %459 : vector<2x32xf32>
    %cst_100 = arith.constant 1.000000e+00 : f32
    %461 = vector.broadcast %cst_100 : f32 to vector<2x32xf32>
    %462 = arith.addf %461, %460 : vector<2x32xf32>
    %463 = arith.divf %461, %462 : vector<2x32xf32>
    %464 = arith.mulf %455, %436 : vector<2x32xf32>
    %465 = arith.mulf %449, %457 : vector<2x32xf32>
    %466 = arith.addf %464, %465 : vector<2x32xf32>
    %467 = math.tanh %466 : vector<2x32xf32>
    %468 = arith.mulf %463, %467 : vector<2x32xf32>
    %c12_101 = arith.constant 12 : index
    %c0_102 = arith.constant 0 : index
    %469 = vector.load %arg10[%c12_101, %c0_102] : memref<16x32xf32, #tpu.memory_space<vmem>>, vector<2x32xf32>
    tpu.vector_store %arg10[%c12_101, %c0_102], %468 {strides = array<i32>} : memref<16x32xf32, #tpu.memory_space<vmem>>, vector<2x32xf32>,
    %470 = vector.extract_strided_slice %257 {offsets = [14, 0], sizes = [2, 128], strides = [1, 1]} : vector<16x128xf32> to vector<2x128xf32>
    %471 = arith.truncf %468 : vector<2x32xf32> to vector<2x32xbf16>
    %cst_103 = arith.constant dense<0.000000e+00> : vector<2x128xf32>
    %472 = tpu.matmul %471, %253, %cst_103 {dimension_numbers = #tpu.dot_dimension_numbers<[1], [0], [0], [1], [0, 0, 1, 1], [], []>} : vector<2x32xbf16>, vector<32x128xbf16>, vector<2x128xf32> -> vector<2x128xf32>
    %473 = arith.addf %470, %472 : vector<2x128xf32>
    %474 = vector.extract_strided_slice %473 {offsets = [0, 0], sizes = [2, 32], strides = [1, 1]} : vector<2x128xf32> to vector<2x32xf32>
    %475 = arith.negf %474 : vector<2x32xf32>
    %476 = math.exp %475 : vector<2x32xf32>
    %cst_104 = arith.constant 1.000000e+00 : f32
    %477 = vector.broadcast %cst_104 : f32 to vector<2x32xf32>
    %478 = arith.addf %477, %476 : vector<2x32xf32>
    %479 = arith.divf %477, %478 : vector<2x32xf32>
    %480 = vector.extract_strided_slice %473 {offsets = [0, 32], sizes = [2, 32], strides = [1, 1]} : vector<2x128xf32> to vector<2x32xf32>
    %481 = arith.negf %480 : vector<2x32xf32>
    %482 = math.exp %481 : vector<2x32xf32>
    %cst_105 = arith.constant 1.000000e+00 : f32
    %483 = vector.broadcast %cst_105 : f32 to vector<2x32xf32>
    %484 = arith.addf %483, %482 : vector<2x32xf32>
    %485 = arith.divf %483, %484 : vector<2x32xf32>
    %486 = vector.extract_strided_slice %473 {offsets = [0, 64], sizes = [2, 32], strides = [1, 1]} : vector<2x128xf32> to vector<2x32xf32>
    %487 = math.tanh %486 : vector<2x32xf32>
    %488 = vector.extract_strided_slice %473 {offsets = [0, 96], sizes = [2, 32], strides = [1, 1]} : vector<2x128xf32> to vector<2x32xf32>
    %489 = arith.negf %488 : vector<2x32xf32>
    %490 = math.exp %489 : vector<2x32xf32>
    %cst_106 = arith.constant 1.000000e+00 : f32
    %491 = vector.broadcast %cst_106 : f32 to vector<2x32xf32>
    %492 = arith.addf %491, %490 : vector<2x32xf32>
    %493 = arith.divf %491, %492 : vector<2x32xf32>
    %494 = arith.mulf %485, %466 : vector<2x32xf32>
    %495 = arith.mulf %479, %487 : vector<2x32xf32>
    %496 = arith.addf %494, %495 : vector<2x32xf32>
    %497 = math.tanh %496 : vector<2x32xf32>
    %498 = arith.mulf %493, %497 : vector<2x32xf32>
    %c14_107 = arith.constant 14 : index
    %c0_108 = arith.constant 0 : index
    %499 = vector.load %arg10[%c14_107, %c0_108] : memref<16x32xf32, #tpu.memory_space<vmem>>, vector<2x32xf32>
    tpu.vector_store %arg10[%c14_107, %c0_108], %498 {strides = array<i32>} : memref<16x32xf32, #tpu.memory_space<vmem>>, vector<2x32xf32>,
    %c0_109 = arith.constant 0 : index
    %c0_110 = arith.constant 0 : index
    %500 = vector.load %arg10[%c0_109, %c0_110] : memref<16x32xf32, #tpu.memory_space<vmem>>, vector<16x32xf32>
    %501 = arith.truncf %500 : vector<16x32xf32> to vector<16x32xbf16>
    %c0_111 = arith.constant 0 : index
    %c0_112 = arith.constant 0 : index
    %502 = vector.load %arg7[%c0_111, %c0_112] : memref<32x128xbf16, #tpu.memory_space<vmem>>, vector<32x128xbf16>
    %cst_113 = arith.constant dense<0.000000e+00> : vector<16x128xf32>
    %503 = tpu.matmul %501, %502, %cst_113 {dimension_numbers = #tpu.dot_dimension_numbers<[1], [0], [0], [1], [0, 0, 1, 1], [], []>} : vector<16x32xbf16>, vector<32x128xbf16>, vector<16x128xf32> -> vector<16x128xf32>
    %c0_114 = arith.constant 0 : index
    %c0_115 = arith.constant 0 : index
    %504 = vector.load %arg8[%c0_114, %c0_115] : memref<1x128xf32, #tpu.memory_space<vmem>>, vector<1x128xf32>
    %505 = vector.broadcast %504 : vector<1x128xf32> to vector<16x128xf32>
    %506 = arith.addf %503, %505 : vector<16x128xf32>
    %c0_116 = arith.constant 0 : index
    %c0_117 = arith.constant 0 : index
    %507 = vector.load %arg9[%c0_116, %c0_117] : memref<16x128xf32, #tpu.memory_space<vmem>>, vector<16x128xf32>
    tpu.vector_store %arg9[%c0_116, %c0_117], %506 {strides = array<i32>} : memref<16x128xf32, #tpu.memory_space<vmem>>, vector<16x128xf32>,
    return
  }
}

</mosaic_0001>

<llo_original>
// kernel: simple_lstm_many2many_forward.1
$region0: #{simple_lstm_many2many_forward.1}
  #allocation0 [shape = 'u32[]', space=smem, size = 0x4, offset = 0x4, fixed_abs, tag = 'smem constant byte address 0x4 - core index']
  #allocation1 [shape = 'u32[144,128]{1,0:T(1,128)}', space=vmem, size = 0x12000, scoped, tag = 'internal scratch']
  #allocation2 [shape = 'f32[16,32]{1,0:T(8,128)}', space=vmem, size = 0x2000, scoped, tag = 'scratch operand']
  %s0 = inlined_call_operand.vmem [shape: f32[16,16], index: 0, kind: input, shape index: {}]
  %s1 = inlined_call_operand.hbm [shape: bf16[16,128], index: 1, kind: input, shape index: {}]
  %s2 = inlined_call_operand.vmem [shape: bf16[32,128], index: 2, kind: input, shape index: {}]
  %s3 = inlined_call_operand.vmem [shape: f32[1,128], index: 3, kind: input, shape index: {}]
  %s4 = inlined_call_operand.vmem [shape: bf16[32,128], index: 4, kind: input, shape index: {}]
  %s5 = inlined_call_operand.vmem [shape: bf16[32,128], index: 5, kind: input, shape index: {}]
  %s6 = inlined_call_operand.vmem [shape: f32[1,128], index: 6, kind: input, shape index: {}]
  %s7 = inlined_call_operand.hbm [shape: bf16[32,128], index: 7, kind: input, shape index: {}]
  %s8 = inlined_call_operand.hbm [shape: f32[1,128], index: 8, kind: input, shape index: {}]
  %s9 = inlined_call_operand.vmem [shape: f32[16,128], index: 9, kind: output, shape index: {}]
  %s10 = sld [smem:[#allocation0]]
  $region58: #{simple_lstm_many2many_forward.1} parent=0
    _
  %s12 = ssub.s32 1, %s10
  %s13 = scalar_select 0, %s12, %s10
  $region1: #{simple_lstm_many2many_forward.1} parent=0
    #allocation3 [shape = 'u8[4096]{0}', space=vmem, size = 0x1000, scoped, tag = 'input window, operand 1, single buffered']
    #allocation4 [shape = 's32[1]{0}', space=sflag, size = 0x4, scoped, tag = 'scoped memory for simple_lstm_many2many_forward.1']
    #allocation5 [shape = 'u8[8192]{0}', space=vmem, size = 0x2000, scoped, tag = 'input window, operand 7, single buffered']
    #allocation6 [shape = 's32[1]{0}', space=sflag, size = 0x4, scoped, tag = 'scoped memory for simple_lstm_many2many_forward.1']
    #allocation7 [shape = 'u8[512]{0}', space=vmem, size = 0x400, scoped, tag = 'input window, operand 8, single buffered']
    %14 = vsyncpa [#allocation4], 0
    %15 = vsyncpa [#allocation6], 0
    // Predicated region
    $region2: #{simple_lstm_many2many_forward.1} parent=1 // pred_check
      _
    $region3: #{simple_lstm_many2many_forward.1} parent=1 // pred_check_branch
      %17 = sbr.rel (0) target = $region5
    $region4: #{simple_lstm_many2many_forward.1} parent=1 // pred_region
      _
    $region5: #{simple_lstm_many2many_forward.1} parent=1 // pred_fallthru
      _
    // Predicated region
    $region6: #{simple_lstm_many2many_forward.1} parent=1 // pred_check
      _
    $region7: #{simple_lstm_many2many_forward.1} parent=1 // pred_check_branch
      %19 = sbr.rel (0) target = $region9
    $region8: #{simple_lstm_many2many_forward.1} parent=1 // pred_region
      %s21 = ssub.s32 128, 128
      %22 = vsyncadd [#allocation4], %s21
      %s23 = sshll.u32 [#allocation3], 4
      %s24 = int_to_ptr.vmem [resolvable:$true] %s23
      %29 = dma.hbm_to_vmem [thread:$0]  %s1, 128, %s24, [#allocation4], 64, 64, 4
    $region9: #{simple_lstm_many2many_forward.1} parent=1 // pred_fallthru
      _
    // Predicated region
    $region10: #{simple_lstm_many2many_forward.1} parent=1 // pred_check
      _
    $region11: #{simple_lstm_many2many_forward.1} parent=1 // pred_check_branch
      %31 = sbr.rel (0) target = $region13
    $region12: #{simple_lstm_many2many_forward.1} parent=1 // pred_region
      _
    $region13: #{simple_lstm_many2many_forward.1} parent=1 // pred_fallthru
      _
    // Predicated region
    $region14: #{simple_lstm_many2many_forward.1} parent=1 // pred_check
      _
    $region15: #{simple_lstm_many2many_forward.1} parent=1 // pred_check_branch
      %33 = sbr.rel (0) target = $region17
    $region16: #{simple_lstm_many2many_forward.1} parent=1 // pred_region
      _
    $region17: #{simple_lstm_many2many_forward.1} parent=1 // pred_fallthru
      _
    // Predicated region
    $region18: #{simple_lstm_many2many_forward.1} parent=1 // pred_check
      _
    $region19: #{simple_lstm_many2many_forward.1} parent=1 // pred_check_branch
      %35 = sbr.rel (0) target = $region21
    $region20: #{simple_lstm_many2many_forward.1} parent=1 // pred_region
      _
    $region21: #{simple_lstm_many2many_forward.1} parent=1 // pred_fallthru
      _
    // Predicated region
    $region22: #{simple_lstm_many2many_forward.1} parent=1 // pred_check
      _
    $region23: #{simple_lstm_many2many_forward.1} parent=1 // pred_check_branch
      %37 = sbr.rel (0) target = $region25
    $region24: #{simple_lstm_many2many_forward.1} parent=1 // pred_region
      _
    $region25: #{simple_lstm_many2many_forward.1} parent=1 // pred_fallthru
      _
    // Predicated region
    $region26: #{simple_lstm_many2many_forward.1} parent=1 // pred_check
      _
    $region27: #{simple_lstm_many2many_forward.1} parent=1 // pred_check_branch
      %39 = sbr.rel (0) target = $region29
    $region28: #{simple_lstm_many2many_forward.1} parent=1 // pred_region
      _
    $region29: #{simple_lstm_many2many_forward.1} parent=1 // pred_fallthru
      _
    // Predicated region
    $region30: #{simple_lstm_many2many_forward.1} parent=1 // pred_check
      _
    $region31: #{simple_lstm_many2many_forward.1} parent=1 // pred_check_branch
      %41 = sbr.rel (0) target = $region33
    $region32: #{simple_lstm_many2many_forward.1} parent=1 // pred_region
      %s43 = ssub.s32 256, 256
      %44 = vsyncadd [#allocation6], %s43
      %s45 = sshll.u32 [#allocation5], 4
      %s46 = int_to_ptr.vmem [resolvable:$true] %s45
      %51 = dma.hbm_to_vmem [thread:$0]  %s7, 256, %s46, [#allocation6], 64, 64, 4
    $region33: #{simple_lstm_many2many_forward.1} parent=1 // pred_fallthru
      _
    // Predicated region
    $region34: #{simple_lstm_many2many_forward.1} parent=1 // pred_check
      _
    $region35: #{simple_lstm_many2many_forward.1} parent=1 // pred_check_branch
      %53 = sbr.rel (0) target = $region37
    $region36: #{simple_lstm_many2many_forward.1} parent=1 // pred_region
      %s55 = ssub.s32 16, 16
      %56 = vsyncadd [#allocation6], %s55
      %s58 = sshll.u32 [#allocation7], 4
      %s59 = int_to_ptr.vmem [resolvable:$true] %s58
      %61 = dma.hbm_to_vmem [thread:$0]  %s8, 16, %s59, [#allocation6]
    $region37: #{simple_lstm_many2many_forward.1} parent=1 // pred_fallthru
      _
    // Predicated region
    $region38: #{simple_lstm_many2many_forward.1} parent=1 // pred_check
      _
    $region39: #{simple_lstm_many2many_forward.1} parent=1 // pred_check_branch
      %63 = sbr.rel (0) target = $region41
    $region40: #{simple_lstm_many2many_forward.1} parent=1 // pred_region
      %64 = dma.done [#allocation4], 128
    $region41: #{simple_lstm_many2many_forward.1} parent=1 // pred_fallthru
      _
    // Predicated region
    $region42: #{simple_lstm_many2many_forward.1} parent=1 // pred_check
      _
    $region43: #{simple_lstm_many2many_forward.1} parent=1 // pred_check_branch
      %66 = sbr.rel (0) target = $region45
    $region44: #{simple_lstm_many2many_forward.1} parent=1 // pred_region
      %67 = dma.done [#allocation6], 256
    $region45: #{simple_lstm_many2many_forward.1} parent=1 // pred_fallthru
      _
    // Predicated region
    $region46: #{simple_lstm_many2many_forward.1} parent=1 // pred_check
      _
    $region47: #{simple_lstm_many2many_forward.1} parent=1 // pred_check_branch
      %69 = sbr.rel (0) target = $region49
    $region48: #{simple_lstm_many2many_forward.1} parent=1 // pred_region
      %70 = dma.done [#allocation6], 16
    $region49: #{simple_lstm_many2many_forward.1} parent=1 // pred_fallthru
      _
    %v72 = vld [vmem:[%s0] sm:$0xff]
    %v73 = vld [vmem:[%s0 + $0x8] sm:$0xff]
    %v74 = vpack.c.bf16 %v73, %v72
    %v75 = vld [vmem:[#allocation3] sm:$0xf]
    %v76 = vld [vmem:[#allocation3 + $0x4] sm:$0xf]
    %v77 = vld [vmem:[%s2] sm:$0xf]
    %v78 = vld [vmem:[%s2 + $0x4] sm:$0xf]
    %v79 = vld [vmem:[%s2 + $0x8] sm:$0xf]
    %v80 = vld [vmem:[%s2 + $0xc] sm:$0xf]
    %v81 = vld [vmem:[%s3] sm:$0x1]
    %v83 = vlaneseq
    %v84 = vshrl.u32 %v83, 7
    %v85 = vsub.s32 0, %v84
    %v86 = vrot.slane %v81, %v85
    %v90 = vunpack.c.l.b16 %v75
    %v91 = vunpack.c.l.b16 %v76
    %v92 = vpack.c.b16 %v91, %v90
    %vm94 = vcmask 130048
    %v96 = vsel %vm94, %v74, 0
    %98 = vmatprep.subr.bf16.mxu0 0
    %99 = vmatpush1.bf16.msra.mxu0 %v92
    %100 = vmatprep.subr.bf16.mxu0 0
    %101 = vmatpush1.bf16.msra.mxu0 0
    %102 = vmatprep.subr.bf16.mxu0 0
    %103 = vmatpush1.bf16.msra.mxu0 0
    %104 = vmatprep.subr.bf16.mxu0 0
    %105 = vmatpush1.bf16.msra.mxu0 0
    %106 = vmatprep.subr.bf16.mxu0 0
    %107 = vmatpush1.bf16.msra.mxu0 0
    %108 = vmatprep.subr.bf16.mxu0 0
    %109 = vmatpush1.bf16.msra.mxu0 0
    %110 = vmatprep.subr.bf16.mxu0 0
    %111 = vmatpush1.bf16.msra.mxu0 0
    %112 = vmatprep.subr.bf16.mxu0 0
    %113 = vmatpush1.bf16.msra.mxu0 0
    %114 = vmatprep.subr.bf16.mxu0 0
    %115 = vmatpush1.bf16.msra.mxu0 0
    %116 = vmatprep.subr.bf16.mxu0 0
    %117 = vmatpush1.bf16.msra.mxu0 0
    %118 = vmatprep.subr.bf16.mxu0 0
    %119 = vmatpush1.bf16.msra.mxu0 0
    %120 = vmatprep.subr.bf16.mxu0 0
    %121 = vmatpush1.bf16.msra.mxu0 0
    %122 = vmatprep.subr.bf16.mxu0 0
    %123 = vmatpush1.bf16.msra.mxu0 0
    %124 = vmatprep.subr.bf16.mxu0 0
    %125 = vmatpush1.bf16.msra.mxu0 0
    %126 = vmatprep.subr.bf16.mxu0 0
    %127 = vmatpush1.bf16.msra.mxu0 0
    %128 = vmatprep.subr.bf16.mxu0 0
    %129 = vmatpush1.bf16.msra.mxu0 0
    %130 = vmatprep.mubr.bf16.mxu0 0
    %131 = vmatmul.mubr.bf16.gmra.mrb[0].mxu0 %v96
    %v132 = vpop.f32.mrb[0].mxu0
    %v133 = vadd.f32 %v86, %v132
    %v134 = vpop.f32.mrb[0].mxu0
    %v135 = vpop.f32.mrb[0].mxu0
    %v136 = vadd.f32 %v86, %v135
    %v137 = vpop.f32.mrb[0].mxu0
    %138 = vdwg.mxu0
    %v143 = vunpack.c.l.b16 %v77
    %v144 = vunpack.c.l.b16 %v78
    %v145 = vunpack.c.l.b16 %v79
    %v146 = vunpack.c.l.b16 %v80
    %v147 = vpack.c.b16 %v144, %v143
    %v148 = vpack.c.b16 %v146, %v145
    %vm151 = vcmask 261120
    %v153 = vsel %vm151, 0, 0
    %155 = vmatprep.subr.bf16.mxu0 0
    %156 = vmatpush1.bf16.msra.mxu0 %v147
    %157 = vmatprep.subr.bf16.mxu0 0
    %158 = vmatpush1.bf16.msra.mxu0 %v148
    %159 = vmatprep.subr.bf16.mxu0 0
    %160 = vmatpush1.bf16.msra.mxu0 0
    %161 = vmatprep.subr.bf16.mxu0 0
    %162 = vmatpush1.bf16.msra.mxu0 0
    %163 = vmatprep.subr.bf16.mxu0 0
    %164 = vmatpush1.bf16.msra.mxu0 0
    %165 = vmatprep.subr.bf16.mxu0 0
    %166 = vmatpush1.bf16.msra.mxu0 0
    %167 = vmatprep.subr.bf16.mxu0 0
    %168 = vmatpush1.bf16.msra.mxu0 0
    %169 = vmatprep.subr.bf16.mxu0 0
    %170 = vmatpush1.bf16.msra.mxu0 0
    %171 = vmatprep.subr.bf16.mxu0 0
    %172 = vmatpush1.bf16.msra.mxu0 0
    %173 = vmatprep.subr.bf16.mxu0 0
    %174 = vmatpush1.bf16.msra.mxu0 0
    %175 = vmatprep.subr.bf16.mxu0 0
    %176 = vmatpush1.bf16.msra.mxu0 0
    %177 = vmatprep.subr.bf16.mxu0 0
    %178 = vmatpush1.bf16.msra.mxu0 0
    %179 = vmatprep.subr.bf16.mxu0 0
    %180 = vmatpush1.bf16.msra.mxu0 0
    %181 = vmatprep.subr.bf16.mxu0 0
    %182 = vmatpush1.bf16.msra.mxu0 0
    %183 = vmatprep.subr.bf16.mxu0 0
    %184 = vmatpush1.bf16.msra.mxu0 0
    %185 = vmatprep.subr.bf16.mxu0 0
    %186 = vmatpush1.bf16.msra.mxu0 0
    %187 = vmatprep.mubr.bf16.mxu0 0
    %188 = vmatmul.mubr.bf16.gmra.mrb[0].mxu0 %v153
    %v189 = vpop.f32.mrb[0].mxu0
    %v190 = vadd.f32 0.0, %v189
    %v191 = vpop.f32.mrb[0].mxu0
    %v192 = vpop.f32.mrb[0].mxu0
    %v193 = vpop.f32.mrb[0].mxu0
    %194 = vdwg.mxu0
    %v195 = vadd.f32 %v133, %v190
    %v196 = vxor.u32 %v195, 2147483648
    %v197 = vmul.f32 %v196, 1.442695
    %v198 = vpow.pop %v197
    %v199 = vadd.f32 %v198, 1.0
    %v200 = vrcp.pop %v199
    %v201 = vmul.f32 1.0, %v200
    %v202 = vtanh.pop %v195
    %v203 = vmul.f32 %v201, 0.0
    %205 = vrot.lane.b32.xlu0 %v202, 64
    %v206 = vpop.permute.xlu0 %205
    %v208 = vmul.f32 %v201, %v206
    %210 = vrot.lane.b32.xlu0 %v208, 32
    %v211 = vpop.permute.xlu0 %210
    %v213 = vadd.f32 %v203, %v211
    %v214 = vtanh.pop %v213
    %216 = vrot.lane.b32.xlu0 %v214, 64
    %v217 = vpop.permute.xlu0 %216
    %v219 = vmul.f32 %v201, %v217
    %221 = vrot.lane.b32.xlu0 %v219, 32
    %v222 = vpop.permute.xlu0 %221
    %vm224 = vcmask 254976
    %225 = vst.msk [vmem:[#allocation2] sm:$0x3] %vm224, %v222
    %v226 = vpack.c.bf16 %v219, %v219
    %228 = vrot.lane.b32.xlu0 %v226, 32
    %v229 = vpop.permute.xlu0 %228
    %v231 = vsel %vm151, %v229, 0
    %233 = vmatprep.subr.bf16.mxu0 0
    %234 = vmatpush1.bf16.msra.mxu0 %v147
    %235 = vmatprep.subr.bf16.mxu0 0
    %236 = vmatpush1.bf16.msra.mxu0 %v148
    %237 = vmatprep.subr.bf16.mxu0 0
    %238 = vmatpush1.bf16.msra.mxu0 0
    %239 = vmatprep.subr.bf16.mxu0 0
    %240 = vmatpush1.bf16.msra.mxu0 0
    %241 = vmatprep.subr.bf16.mxu0 0
    %242 = vmatpush1.bf16.msra.mxu0 0
    %243 = vmatprep.subr.bf16.mxu0 0
    %244 = vmatpush1.bf16.msra.mxu0 0
    %245 = vmatprep.subr.bf16.mxu0 0
    %246 = vmatpush1.bf16.msra.mxu0 0
    %247 = vmatprep.subr.bf16.mxu0 0
    %248 = vmatpush1.bf16.msra.mxu0 0
    %249 = vmatprep.subr.bf16.mxu0 0
    %250 = vmatpush1.bf16.msra.mxu0 0
    %251 = vmatprep.subr.bf16.mxu0 0
    %252 = vmatpush1.bf16.msra.mxu0 0
    %253 = vmatprep.subr.bf16.mxu0 0
    %254 = vmatpush1.bf16.msra.mxu0 0
    %255 = vmatprep.subr.bf16.mxu0 0
    %256 = vmatpush1.bf16.msra.mxu0 0
    %257 = vmatprep.subr.bf16.mxu0 0
    %258 = vmatpush1.bf16.msra.mxu0 0
    %259 = vmatprep.subr.bf16.mxu0 0
    %260 = vmatpush1.bf16.msra.mxu0 0
    %261 = vmatprep.subr.bf16.mxu0 0
    %262 = vmatpush1.bf16.msra.mxu0 0
    %263 = vmatprep.subr.bf16.mxu0 0
    %264 = vmatpush1.bf16.msra.mxu0 0
    %265 = vmatprep.mubr.bf16.mxu0 0
    %266 = vmatmul.mubr.bf16.gmra.mrb[0].mxu0 %v231
    %v267 = vpop.f32.mrb[0].mxu0
    %v268 = vadd.f32 0.0, %v267
    %v269 = vpop.f32.mrb[0].mxu0
    %v270 = vpop.f32.mrb[0].mxu0
    %v271 = vpop.f32.mrb[0].mxu0
    %272 = vdwg.mxu0
    %v274 = vrot.slane %v268, 6
    %v276 = vadd.f32 %v133, %v274
    %v277 = vxor.u32 %v276, 2147483648
    %v278 = vmul.f32 %v277, 1.442695
    %v279 = vpow.pop %v278
    %v280 = vadd.f32 %v279, 1.0
    %v281 = vrcp.pop %v280
    %v282 = vmul.f32 1.0, %v281
    %v283 = vtanh.pop %v276
    %v285 = vrot.slane %v213, 6
    %v287 = vmul.f32 %v282, %v285
    %289 = vrot.lane.b32.xlu0 %v283, 64
    %v290 = vpop.permute.xlu0 %289
    %v292 = vmul.f32 %v282, %v290
    %294 = vrot.lane.b32.xlu0 %v292, 32
    %v295 = vpop.permute.xlu0 %294
    %v297 = vadd.f32 %v287, %v295
    %v298 = vtanh.pop %v297
    %300 = vrot.lane.b32.xlu0 %v298, 64
    %v301 = vpop.permute.xlu0 %300
    %v303 = vmul.f32 %v282, %v301
    %305 = vrot.lane.b32.xlu0 %v303, 32
    %v306 = vpop.permute.xlu0 %305
    %vm308 = vcmask 257026
    %309 = vst.msk [vmem:[#allocation2] sm:$0xc] %vm308, %v306
    %v310 = vpack.c.bf16 %v303, %v303
    %v312 = vrot.slane %v310, 1
    %313 = vrot.lane.b32.xlu0 %v312, 32
    %v314 = vpop.permute.xlu0 %313
    %v316 = vsel %vm151, %v314, 0
    %318 = vmatprep.subr.bf16.mxu0 0
    %319 = vmatpush1.bf16.msra.mxu0 %v147
    %320 = vmatprep.subr.bf16.mxu0 0
    %321 = vmatpush1.bf16.msra.mxu0 %v148
    %322 = vmatprep.subr.bf16.mxu0 0
    %323 = vmatpush1.bf16.msra.mxu0 0
    %324 = vmatprep.subr.bf16.mxu0 0
    %325 = vmatpush1.bf16.msra.mxu0 0
    %326 = vmatprep.subr.bf16.mxu0 0
    %327 = vmatpush1.bf16.msra.mxu0 0
    %328 = vmatprep.subr.bf16.mxu0 0
    %329 = vmatpush1.bf16.msra.mxu0 0
    %330 = vmatprep.subr.bf16.mxu0 0
    %331 = vmatpush1.bf16.msra.mxu0 0
    %332 = vmatprep.subr.bf16.mxu0 0
    %333 = vmatpush1.bf16.msra.mxu0 0
    %334 = vmatprep.subr.bf16.mxu0 0
    %335 = vmatpush1.bf16.msra.mxu0 0
    %336 = vmatprep.subr.bf16.mxu0 0
    %337 = vmatpush1.bf16.msra.mxu0 0
    %338 = vmatprep.subr.bf16.mxu0 0
    %339 = vmatpush1.bf16.msra.mxu0 0
    %340 = vmatprep.subr.bf16.mxu0 0
    %341 = vmatpush1.bf16.msra.mxu0 0
    %342 = vmatprep.subr.bf16.mxu0 0
    %343 = vmatpush1.bf16.msra.mxu0 0
    %344 = vmatprep.subr.bf16.mxu0 0
    %345 = vmatpush1.bf16.msra.mxu0 0
    %346 = vmatprep.subr.bf16.mxu0 0
    %347 = vmatpush1.bf16.msra.mxu0 0
    %348 = vmatprep.subr.bf16.mxu0 0
    %349 = vmatpush1.bf16.msra.mxu0 0
    %350 = vmatprep.mubr.bf16.mxu0 0
    %351 = vmatmul.mubr.bf16.gmra.mrb[0].mxu0 %v316
    %v352 = vpop.f32.mrb[0].mxu0
    %v353 = vadd.f32 0.0, %v352
    %v354 = vpop.f32.mrb[0].mxu0
    %v355 = vpop.f32.mrb[0].mxu0
    %v356 = vpop.f32.mrb[0].mxu0
    %357 = vdwg.mxu0
    %v359 = vrot.slane %v353, 4
    %v361 = vadd.f32 %v133, %v359
    %v362 = vxor.u32 %v361, 2147483648
    %v363 = vmul.f32 %v362, 1.442695
    %v364 = vpow.pop %v363
    %v365 = vadd.f32 %v364, 1.0
    %v366 = vrcp.pop %v365
    %v367 = vmul.f32 1.0, %v366
    %v368 = vtanh.pop %v361
    %v370 = vrot.slane %v297, 6
    %v372 = vmul.f32 %v367, %v370
    %374 = vrot.lane.b32.xlu0 %v368, 64
    %v375 = vpop.permute.xlu0 %374
    %v377 = vmul.f32 %v367, %v375
    %379 = vrot.lane.b32.xlu0 %v377, 32
    %v380 = vpop.permute.xlu0 %379
    %v382 = vadd.f32 %v372, %v380
    %v383 = vtanh.pop %v382
    %385 = vrot.lane.b32.xlu0 %v383, 64
    %v386 = vpop.permute.xlu0 %385
    %v388 = vmul.f32 %v367, %v386
    %390 = vrot.lane.b32.xlu0 %v388, 32
    %v391 = vpop.permute.xlu0 %390
    %vm393 = vcmask 259076
    %394 = vst.msk [vmem:[#allocation2] sm:$0x30] %vm393, %v391
    %v395 = vpack.c.bf16 %v388, %v388
    %v397 = vrot.slane %v395, 2
    %398 = vrot.lane.b32.xlu0 %v397, 32
    %v399 = vpop.permute.xlu0 %398
    %v401 = vsel %vm151, %v399, 0
    %403 = vmatprep.subr.bf16.mxu0 0
    %404 = vmatpush1.bf16.msra.mxu0 %v147
    %405 = vmatprep.subr.bf16.mxu0 0
    %406 = vmatpush1.bf16.msra.mxu0 %v148
    %407 = vmatprep.subr.bf16.mxu0 0
    %408 = vmatpush1.bf16.msra.mxu0 0
    %409 = vmatprep.subr.bf16.mxu0 0
    %410 = vmatpush1.bf16.msra.mxu0 0
    %411 = vmatprep.subr.bf16.mxu0 0
    %412 = vmatpush1.bf16.msra.mxu0 0
    %413 = vmatprep.subr.bf16.mxu0 0
    %414 = vmatpush1.bf16.msra.mxu0 0
    %415 = vmatprep.subr.bf16.mxu0 0
    %416 = vmatpush1.bf16.msra.mxu0 0
    %417 = vmatprep.subr.bf16.mxu0 0
    %418 = vmatpush1.bf16.msra.mxu0 0
    %419 = vmatprep.subr.bf16.mxu0 0
    %420 = vmatpush1.bf16.msra.mxu0 0
    %421 = vmatprep.subr.bf16.mxu0 0
    %422 = vmatpush1.bf16.msra.mxu0 0
    %423 = vmatprep.subr.bf16.mxu0 0
    %424 = vmatpush1.bf16.msra.mxu0 0
    %425 = vmatprep.subr.bf16.mxu0 0
    %426 = vmatpush1.bf16.msra.mxu0 0
    %427 = vmatprep.subr.bf16.mxu0 0
    %428 = vmatpush1.bf16.msra.mxu0 0
    %429 = vmatprep.subr.bf16.mxu0 0
    %430 = vmatpush1.bf16.msra.mxu0 0
    %431 = vmatprep.subr.bf16.mxu0 0
    %432 = vmatpush1.bf16.msra.mxu0 0
    %433 = vmatprep.subr.bf16.mxu0 0
    %434 = vmatpush1.bf16.msra.mxu0 0
    %435 = vmatprep.mubr.bf16.mxu0 0
    %436 = vmatmul.mubr.bf16.gmra.mrb[0].mxu0 %v401
    %v437 = vpop.f32.mrb[0].mxu0
    %v438 = vadd.f32 0.0, %v437
    %v439 = vpop.f32.mrb[0].mxu0
    %v440 = vpop.f32.mrb[0].mxu0
    %v441 = vpop.f32.mrb[0].mxu0
    %442 = vdwg.mxu0
    %v444 = vrot.slane %v438, 2
    %v446 = vadd.f32 %v133, %v444
    %v447 = vxor.u32 %v446, 2147483648
    %v448 = vmul.f32 %v447, 1.442695
    %v449 = vpow.pop %v448
    %v450 = vadd.f32 %v449, 1.0
    %v451 = vrcp.pop %v450
    %v452 = vmul.f32 1.0, %v451
    %v453 = vtanh.pop %v446
    %v455 = vrot.slane %v382, 6
    %v457 = vmul.f32 %v452, %v455
    %459 = vrot.lane.b32.xlu0 %v453, 64
    %v460 = vpop.permute.xlu0 %459
    %v462 = vmul.f32 %v452, %v460
    %464 = vrot.lane.b32.xlu0 %v462, 32
    %v465 = vpop.permute.xlu0 %464
    %v467 = vadd.f32 %v457, %v465
    %v468 = vtanh.pop %v467
    %470 = vrot.lane.b32.xlu0 %v468, 64
    %v471 = vpop.permute.xlu0 %470
    %v473 = vmul.f32 %v452, %v471
    %475 = vrot.lane.b32.xlu0 %v473, 32
    %v476 = vpop.permute.xlu0 %475
    %vm478 = vcmask 261126
    %479 = vst.msk [vmem:[#allocation2] sm:$0xc0] %vm478, %v476
    %v480 = vpack.c.bf16 %v473, %v473
    %v482 = vrot.slane %v480, 3
    %483 = vrot.lane.b32.xlu0 %v482, 32
    %v484 = vpop.permute.xlu0 %483
    %v486 = vsel %vm151, %v484, 0
    %488 = vmatprep.subr.bf16.mxu0 0
    %489 = vmatpush1.bf16.msra.mxu0 %v147
    %490 = vmatprep.subr.bf16.mxu0 0
    %491 = vmatpush1.bf16.msra.mxu0 %v148
    %492 = vmatprep.subr.bf16.mxu0 0
    %493 = vmatpush1.bf16.msra.mxu0 0
    %494 = vmatprep.subr.bf16.mxu0 0
    %495 = vmatpush1.bf16.msra.mxu0 0
    %496 = vmatprep.subr.bf16.mxu0 0
    %497 = vmatpush1.bf16.msra.mxu0 0
    %498 = vmatprep.subr.bf16.mxu0 0
    %499 = vmatpush1.bf16.msra.mxu0 0
    %500 = vmatprep.subr.bf16.mxu0 0
    %501 = vmatpush1.bf16.msra.mxu0 0
    %502 = vmatprep.subr.bf16.mxu0 0
    %503 = vmatpush1.bf16.msra.mxu0 0
    %504 = vmatprep.subr.bf16.mxu0 0
    %505 = vmatpush1.bf16.msra.mxu0 0
    %506 = vmatprep.subr.bf16.mxu0 0
    %507 = vmatpush1.bf16.msra.mxu0 0
    %508 = vmatprep.subr.bf16.mxu0 0
    %509 = vmatpush1.bf16.msra.mxu0 0
    %510 = vmatprep.subr.bf16.mxu0 0
    %511 = vmatpush1.bf16.msra.mxu0 0
    %512 = vmatprep.subr.bf16.mxu0 0
    %513 = vmatpush1.bf16.msra.mxu0 0
    %514 = vmatprep.subr.bf16.mxu0 0
    %515 = vmatpush1.bf16.msra.mxu0 0
    %516 = vmatprep.subr.bf16.mxu0 0
    %517 = vmatpush1.bf16.msra.mxu0 0
    %518 = vmatprep.subr.bf16.mxu0 0
    %519 = vmatpush1.bf16.msra.mxu0 0
    %520 = vmatprep.mubr.bf16.mxu0 0
    %521 = vmatmul.mubr.bf16.gmra.mrb[0].mxu0 %v486
    %v522 = vpop.f32.mrb[0].mxu0
    %v523 = vadd.f32 0.0, %v522
    %v524 = vpop.f32.mrb[0].mxu0
    %v525 = vpop.f32.mrb[0].mxu0
    %v526 = vpop.f32.mrb[0].mxu0
    %527 = vdwg.mxu0
    %v528 = vadd.f32 %v136, %v523
    %v529 = vxor.u32 %v528, 2147483648
    %v530 = vmul.f32 %v529, 1.442695
    %v531 = vpow.pop %v530
    %v532 = vadd.f32 %v531, 1.0
    %v533 = vrcp.pop %v532
    %v534 = vmul.f32 1.0, %v533
    %v535 = vtanh.pop %v528
    %v537 = vrot.slane %v467, 6
    %v539 = vmul.f32 %v534, %v537
    %541 = vrot.lane.b32.xlu0 %v535, 64
    %v542 = vpop.permute.xlu0 %541
    %v544 = vmul.f32 %v534, %v542
    %546 = vrot.lane.b32.xlu0 %v544, 32
    %v547 = vpop.permute.xlu0 %546
    %v549 = vadd.f32 %v539, %v547
    %v550 = vtanh.pop %v549
    %552 = vrot.lane.b32.xlu0 %v550, 64
    %v553 = vpop.permute.xlu0 %552
    %v555 = vmul.f32 %v534, %v553
    %557 = vrot.lane.b32.xlu0 %v555, 32
    %v558 = vpop.permute.xlu0 %557
    %560 = vst.msk [vmem:[#allocation2 + $0x8] sm:$0x3] %vm224, %v558
    %v561 = vpack.c.bf16 %v555, %v555
    %563 = vrot.lane.b32.xlu0 %v561, 32
    %v564 = vpop.permute.xlu0 %563
    %v566 = vsel %vm151, %v564, 0
    %568 = vmatprep.subr.bf16.mxu0 0
    %569 = vmatpush1.bf16.msra.mxu0 %v147
    %570 = vmatprep.subr.bf16.mxu0 0
    %571 = vmatpush1.bf16.msra.mxu0 %v148
    %572 = vmatprep.subr.bf16.mxu0 0
    %573 = vmatpush1.bf16.msra.mxu0 0
    %574 = vmatprep.subr.bf16.mxu0 0
    %575 = vmatpush1.bf16.msra.mxu0 0
    %576 = vmatprep.subr.bf16.mxu0 0
    %577 = vmatpush1.bf16.msra.mxu0 0
    %578 = vmatprep.subr.bf16.mxu0 0
    %579 = vmatpush1.bf16.msra.mxu0 0
    %580 = vmatprep.subr.bf16.mxu0 0
    %581 = vmatpush1.bf16.msra.mxu0 0
    %582 = vmatprep.subr.bf16.mxu0 0
    %583 = vmatpush1.bf16.msra.mxu0 0
    %584 = vmatprep.subr.bf16.mxu0 0
    %585 = vmatpush1.bf16.msra.mxu0 0
    %586 = vmatprep.subr.bf16.mxu0 0
    %587 = vmatpush1.bf16.msra.mxu0 0
    %588 = vmatprep.subr.bf16.mxu0 0
    %589 = vmatpush1.bf16.msra.mxu0 0
    %590 = vmatprep.subr.bf16.mxu0 0
    %591 = vmatpush1.bf16.msra.mxu0 0
    %592 = vmatprep.subr.bf16.mxu0 0
    %593 = vmatpush1.bf16.msra.mxu0 0
    %594 = vmatprep.subr.bf16.mxu0 0
    %595 = vmatpush1.bf16.msra.mxu0 0
    %596 = vmatprep.subr.bf16.mxu0 0
    %597 = vmatpush1.bf16.msra.mxu0 0
    %598 = vmatprep.subr.bf16.mxu0 0
    %599 = vmatpush1.bf16.msra.mxu0 0
    %600 = vmatprep.mubr.bf16.mxu0 0
    %601 = vmatmul.mubr.bf16.gmra.mrb[0].mxu0 %v566
    %v602 = vpop.f32.mrb[0].mxu0
    %v603 = vadd.f32 0.0, %v602
    %v604 = vpop.f32.mrb[0].mxu0
    %v605 = vpop.f32.mrb[0].mxu0
    %v606 = vpop.f32.mrb[0].mxu0
    %607 = vdwg.mxu0
    %v609 = vrot.slane %v603, 6
    %v611 = vadd.f32 %v136, %v609
    %v612 = vxor.u32 %v611, 2147483648
    %v613 = vmul.f32 %v612, 1.442695
    %v614 = vpow.pop %v613
    %v615 = vadd.f32 %v614, 1.0
    %v616 = vrcp.pop %v615
    %v617 = vmul.f32 1.0, %v616
    %v618 = vtanh.pop %v611
    %v620 = vrot.slane %v549, 6
    %v622 = vmul.f32 %v617, %v620
    %624 = vrot.lane.b32.xlu0 %v618, 64
    %v625 = vpop.permute.xlu0 %624
    %v627 = vmul.f32 %v617, %v625
    %629 = vrot.lane.b32.xlu0 %v627, 32
    %v630 = vpop.permute.xlu0 %629
    %v632 = vadd.f32 %v622, %v630
    %v633 = vtanh.pop %v632
    %635 = vrot.lane.b32.xlu0 %v633, 64
    %v636 = vpop.permute.xlu0 %635
    %v638 = vmul.f32 %v617, %v636
    %640 = vrot.lane.b32.xlu0 %v638, 32
    %v641 = vpop.permute.xlu0 %640
    %643 = vst.msk [vmem:[#allocation2 + $0x8] sm:$0xc] %vm308, %v641
    %v644 = vpack.c.bf16 %v638, %v638
    %v646 = vrot.slane %v644, 1
    %647 = vrot.lane.b32.xlu0 %v646, 32
    %v648 = vpop.permute.xlu0 %647
    %v650 = vsel %vm151, %v648, 0
    %652 = vmatprep.subr.bf16.mxu0 0
    %653 = vmatpush1.bf16.msra.mxu0 %v147
    %654 = vmatprep.subr.bf16.mxu0 0
    %655 = vmatpush1.bf16.msra.mxu0 %v148
    %656 = vmatprep.subr.bf16.mxu0 0
    %657 = vmatpush1.bf16.msra.mxu0 0
    %658 = vmatprep.subr.bf16.mxu0 0
    %659 = vmatpush1.bf16.msra.mxu0 0
    %660 = vmatprep.subr.bf16.mxu0 0
    %661 = vmatpush1.bf16.msra.mxu0 0
    %662 = vmatprep.subr.bf16.mxu0 0
    %663 = vmatpush1.bf16.msra.mxu0 0
    %664 = vmatprep.subr.bf16.mxu0 0
    %665 = vmatpush1.bf16.msra.mxu0 0
    %666 = vmatprep.subr.bf16.mxu0 0
    %667 = vmatpush1.bf16.msra.mxu0 0
    %668 = vmatprep.subr.bf16.mxu0 0
    %669 = vmatpush1.bf16.msra.mxu0 0
    %670 = vmatprep.subr.bf16.mxu0 0
    %671 = vmatpush1.bf16.msra.mxu0 0
    %672 = vmatprep.subr.bf16.mxu0 0
    %673 = vmatpush1.bf16.msra.mxu0 0
    %674 = vmatprep.subr.bf16.mxu0 0
    %675 = vmatpush1.bf16.msra.mxu0 0
    %676 = vmatprep.subr.bf16.mxu0 0
    %677 = vmatpush1.bf16.msra.mxu0 0
    %678 = vmatprep.subr.bf16.mxu0 0
    %679 = vmatpush1.bf16.msra.mxu0 0
    %680 = vmatprep.subr.bf16.mxu0 0
    %681 = vmatpush1.bf16.msra.mxu0 0
    %682 = vmatprep.subr.bf16.mxu0 0
    %683 = vmatpush1.bf16.msra.mxu0 0
    %684 = vmatprep.mubr.bf16.mxu0 0
    %685 = vmatmul.mubr.bf16.gmra.mrb[0].mxu0 %v650
    %v686 = vpop.f32.mrb[0].mxu0
    %v687 = vadd.f32 0.0, %v686
    %v688 = vpop.f32.mrb[0].mxu0
    %v689 = vpop.f32.mrb[0].mxu0
    %v690 = vpop.f32.mrb[0].mxu0
    %691 = vdwg.mxu0
    %v693 = vrot.slane %v687, 4
    %v695 = vadd.f32 %v136, %v693
    %v696 = vxor.u32 %v695, 2147483648
    %v697 = vmul.f32 %v696, 1.442695
    %v698 = vpow.pop %v697
    %v699 = vadd.f32 %v698, 1.0
    %v700 = vrcp.pop %v699
    %v701 = vmul.f32 1.0, %v700
    %v702 = vtanh.pop %v695
    %v704 = vrot.slane %v632, 6
    %v706 = vmul.f32 %v701, %v704
    %708 = vrot.lane.b32.xlu0 %v702, 64
    %v709 = vpop.permute.xlu0 %708
    %v711 = vmul.f32 %v701, %v709
    %713 = vrot.lane.b32.xlu0 %v711, 32
    %v714 = vpop.permute.xlu0 %713
    %v716 = vadd.f32 %v706, %v714
    %v717 = vtanh.pop %v716
    %719 = vrot.lane.b32.xlu0 %v717, 64
    %v720 = vpop.permute.xlu0 %719
    %v722 = vmul.f32 %v701, %v720
    %724 = vrot.lane.b32.xlu0 %v722, 32
    %v725 = vpop.permute.xlu0 %724
    %727 = vst.msk [vmem:[#allocation2 + $0x8] sm:$0x30] %vm393, %v725
    %v728 = vpack.c.bf16 %v722, %v722
    %v730 = vrot.slane %v728, 2
    %731 = vrot.lane.b32.xlu0 %v730, 32
    %v732 = vpop.permute.xlu0 %731
    %v734 = vsel %vm151, %v732, 0
    %736 = vmatprep.subr.bf16.mxu0 0
    %737 = vmatpush1.bf16.msra.mxu0 %v147
    %738 = vmatprep.subr.bf16.mxu0 0
    %739 = vmatpush1.bf16.msra.mxu0 %v148
    %740 = vmatprep.subr.bf16.mxu0 0
    %741 = vmatpush1.bf16.msra.mxu0 0
    %742 = vmatprep.subr.bf16.mxu0 0
    %743 = vmatpush1.bf16.msra.mxu0 0
    %744 = vmatprep.subr.bf16.mxu0 0
    %745 = vmatpush1.bf16.msra.mxu0 0
    %746 = vmatprep.subr.bf16.mxu0 0
    %747 = vmatpush1.bf16.msra.mxu0 0
    %748 = vmatprep.subr.bf16.mxu0 0
    %749 = vmatpush1.bf16.msra.mxu0 0
    %750 = vmatprep.subr.bf16.mxu0 0
    %751 = vmatpush1.bf16.msra.mxu0 0
    %752 = vmatprep.subr.bf16.mxu0 0
    %753 = vmatpush1.bf16.msra.mxu0 0
    %754 = vmatprep.subr.bf16.mxu0 0
    %755 = vmatpush1.bf16.msra.mxu0 0
    %756 = vmatprep.subr.bf16.mxu0 0
    %757 = vmatpush1.bf16.msra.mxu0 0
    %758 = vmatprep.subr.bf16.mxu0 0
    %759 = vmatpush1.bf16.msra.mxu0 0
    %760 = vmatprep.subr.bf16.mxu0 0
    %761 = vmatpush1.bf16.msra.mxu0 0
    %762 = vmatprep.subr.bf16.mxu0 0
    %763 = vmatpush1.bf16.msra.mxu0 0
    %764 = vmatprep.subr.bf16.mxu0 0
    %765 = vmatpush1.bf16.msra.mxu0 0
    %766 = vmatprep.subr.bf16.mxu0 0
    %767 = vmatpush1.bf16.msra.mxu0 0
    %768 = vmatprep.mubr.bf16.mxu0 0
    %769 = vmatmul.mubr.bf16.gmra.mrb[0].mxu0 %v734
    %v770 = vpop.f32.mrb[0].mxu0
    %v771 = vadd.f32 0.0, %v770
    %v772 = vpop.f32.mrb[0].mxu0
    %v773 = vpop.f32.mrb[0].mxu0
    %v774 = vpop.f32.mrb[0].mxu0
    %775 = vdwg.mxu0
    %v777 = vrot.slane %v771, 2
    %v779 = vadd.f32 %v136, %v777
    %v780 = vxor.u32 %v779, 2147483648
    %v781 = vmul.f32 %v780, 1.442695
    %v782 = vpow.pop %v781
    %v783 = vadd.f32 %v782, 1.0
    %v784 = vrcp.pop %v783
    %v785 = vmul.f32 1.0, %v784
    %v786 = vtanh.pop %v779
    %v788 = vrot.slane %v716, 6
    %v790 = vmul.f32 %v785, %v788
    %792 = vrot.lane.b32.xlu0 %v786, 64
    %v793 = vpop.permute.xlu0 %792
    %v795 = vmul.f32 %v785, %v793
    %797 = vrot.lane.b32.xlu0 %v795, 32
    %v798 = vpop.permute.xlu0 %797
    %v800 = vadd.f32 %v790, %v798
    %v801 = vtanh.pop %v800
    %803 = vrot.lane.b32.xlu0 %v801, 64
    %v804 = vpop.permute.xlu0 %803
    %v806 = vmul.f32 %v785, %v804
    %808 = vrot.lane.b32.xlu0 %v806, 32
    %v809 = vpop.permute.xlu0 %808
    %811 = vst.msk [vmem:[#allocation2 + $0x8] sm:$0xc0] %vm478, %v809
    %v812 = vld [vmem:[#allocation2] sm:$0xff]
    %v813 = vld [vmem:[#allocation2 + $0x8] sm:$0xff]
    %v814 = vpack.c.bf16 %v813, %v812
    %v815 = vld [vmem:[%s4] sm:$0xf]
    %v816 = vld [vmem:[%s4 + $0x4] sm:$0xf]
    %v817 = vld [vmem:[%s4 + $0x8] sm:$0xf]
    %v818 = vld [vmem:[%s4 + $0xc] sm:$0xf]
    %v819 = vld [vmem:[%s5] sm:$0xf]
    %v820 = vld [vmem:[%s5 + $0x4] sm:$0xf]
    %v821 = vld [vmem:[%s5 + $0x8] sm:$0xf]
    %v822 = vld [vmem:[%s5 + $0xc] sm:$0xf]
    %v823 = vld [vmem:[%s6] sm:$0x1]
    %v825 = vlaneseq
    %v826 = vshrl.u32 %v825, 7
    %v827 = vsub.s32 0, %v826
    %v828 = vrot.slane %v823, %v827
    %v834 = vunpack.c.l.b16 %v815
    %v835 = vunpack.c.l.b16 %v816
    %v836 = vunpack.c.l.b16 %v817
    %v837 = vunpack.c.l.b16 %v818
    %v838 = vpack.c.b16 %v835, %v834
    %v839 = vpack.c.b16 %v837, %v836
    %v843 = vsel %vm151, %v814, 0
    %845 = vmatprep.subr.bf16.mxu0 0
    %846 = vmatpush1.bf16.msra.mxu0 %v838
    %847 = vmatprep.subr.bf16.mxu0 0
    %848 = vmatpush1.bf16.msra.mxu0 %v839
    %849 = vmatprep.subr.bf16.mxu0 0
    %850 = vmatpush1.bf16.msra.mxu0 0
    %851 = vmatprep.subr.bf16.mxu0 0
    %852 = vmatpush1.bf16.msra.mxu0 0
    %853 = vmatprep.subr.bf16.mxu0 0
    %854 = vmatpush1.bf16.msra.mxu0 0
    %855 = vmatprep.subr.bf16.mxu0 0
    %856 = vmatpush1.bf16.msra.mxu0 0
    %857 = vmatprep.subr.bf16.mxu0 0
    %858 = vmatpush1.bf16.msra.mxu0 0
    %859 = vmatprep.subr.bf16.mxu0 0
    %860 = vmatpush1.bf16.msra.mxu0 0
    %861 = vmatprep.subr.bf16.mxu0 0
    %862 = vmatpush1.bf16.msra.mxu0 0
    %863 = vmatprep.subr.bf16.mxu0 0
    %864 = vmatpush1.bf16.msra.mxu0 0
    %865 = vmatprep.subr.bf16.mxu0 0
    %866 = vmatpush1.bf16.msra.mxu0 0
    %867 = vmatprep.subr.bf16.mxu0 0
    %868 = vmatpush1.bf16.msra.mxu0 0
    %869 = vmatprep.subr.bf16.mxu0 0
    %870 = vmatpush1.bf16.msra.mxu0 0
    %871 = vmatprep.subr.bf16.mxu0 0
    %872 = vmatpush1.bf16.msra.mxu0 0
    %873 = vmatprep.subr.bf16.mxu0 0
    %874 = vmatpush1.bf16.msra.mxu0 0
    %875 = vmatprep.subr.bf16.mxu0 0
    %876 = vmatpush1.bf16.msra.mxu0 0
    %877 = vmatprep.mubr.bf16.mxu0 0
    %878 = vmatmul.mubr.bf16.gmra.mrb[0].mxu0 %v843
    %v879 = vpop.f32.mrb[0].mxu0
    %v880 = vadd.f32 %v828, %v879
    %v881 = vpop.f32.mrb[0].mxu0
    %v882 = vpop.f32.mrb[0].mxu0
    %v883 = vadd.f32 %v828, %v882
    %v884 = vpop.f32.mrb[0].mxu0
    %885 = vdwg.mxu0
    %v890 = vunpack.c.l.b16 %v819
    %v891 = vunpack.c.l.b16 %v820
    %v892 = vunpack.c.l.b16 %v821
    %v893 = vunpack.c.l.b16 %v822
    %v894 = vpack.c.b16 %v891, %v890
    %v895 = vpack.c.b16 %v893, %v892
    %898 = vmatprep.subr.bf16.mxu0 0
    %899 = vmatpush1.bf16.msra.mxu0 %v894
    %900 = vmatprep.subr.bf16.mxu0 0
    %901 = vmatpush1.bf16.msra.mxu0 %v895
    %902 = vmatprep.subr.bf16.mxu0 0
    %903 = vmatpush1.bf16.msra.mxu0 0
    %904 = vmatprep.subr.bf16.mxu0 0
    %905 = vmatpush1.bf16.msra.mxu0 0
    %906 = vmatprep.subr.bf16.mxu0 0
    %907 = vmatpush1.bf16.msra.mxu0 0
    %908 = vmatprep.subr.bf16.mxu0 0
    %909 = vmatpush1.bf16.msra.mxu0 0
    %910 = vmatprep.subr.bf16.mxu0 0
    %911 = vmatpush1.bf16.msra.mxu0 0
    %912 = vmatprep.subr.bf16.mxu0 0
    %913 = vmatpush1.bf16.msra.mxu0 0
    %914 = vmatprep.subr.bf16.mxu0 0
    %915 = vmatpush1.bf16.msra.mxu0 0
    %916 = vmatprep.subr.bf16.mxu0 0
    %917 = vmatpush1.bf16.msra.mxu0 0
    %918 = vmatprep.subr.bf16.mxu0 0
    %919 = vmatpush1.bf16.msra.mxu0 0
    %920 = vmatprep.subr.bf16.mxu0 0
    %921 = vmatpush1.bf16.msra.mxu0 0
    %922 = vmatprep.subr.bf16.mxu0 0
    %923 = vmatpush1.bf16.msra.mxu0 0
    %924 = vmatprep.subr.bf16.mxu0 0
    %925 = vmatpush1.bf16.msra.mxu0 0
    %926 = vmatprep.subr.bf16.mxu0 0
    %927 = vmatpush1.bf16.msra.mxu0 0
    %928 = vmatprep.subr.bf16.mxu0 0
    %929 = vmatpush1.bf16.msra.mxu0 0
    %930 = vmatprep.mubr.bf16.mxu0 0
    %931 = vmatmul.mubr.bf16.gmra.mrb[0].mxu0 %v153
    %v932 = vpop.f32.mrb[0].mxu0
    %v933 = vadd.f32 0.0, %v932
    %v934 = vpop.f32.mrb[0].mxu0
    %v935 = vpop.f32.mrb[0].mxu0
    %v936 = vpop.f32.mrb[0].mxu0
    %937 = vdwg.mxu0
    %v938 = vadd.f32 %v880, %v933
    %v939 = vxor.u32 %v938, 2147483648
    %v940 = vmul.f32 %v939, 1.442695
    %v941 = vpow.pop %v940
    %v942 = vadd.f32 %v941, 1.0
    %v943 = vrcp.pop %v942
    %v944 = vmul.f32 1.0, %v943
    %v945 = vtanh.pop %v938
    %v946 = vmul.f32 %v944, 0.0
    %948 = vrot.lane.b32.xlu0 %v945, 64
    %v949 = vpop.permute.xlu0 %948
    %v951 = vmul.f32 %v944, %v949
    %953 = vrot.lane.b32.xlu0 %v951, 32
    %v954 = vpop.permute.xlu0 %953
    %v956 = vadd.f32 %v946, %v954
    %v957 = vtanh.pop %v956
    %959 = vrot.lane.b32.xlu0 %v957, 64
    %v960 = vpop.permute.xlu0 %959
    %v962 = vmul.f32 %v944, %v960
    %964 = vrot.lane.b32.xlu0 %v962, 32
    %v965 = vpop.permute.xlu0 %964
    %967 = vst.msk [vmem:[#allocation2] sm:$0x3] %vm224, %v965
    %v968 = vpack.c.bf16 %v962, %v962
    %970 = vrot.lane.b32.xlu0 %v968, 32
    %v971 = vpop.permute.xlu0 %970
    %v973 = vsel %vm151, %v971, 0
    %975 = vmatprep.subr.bf16.mxu0 0
    %976 = vmatpush1.bf16.msra.mxu0 %v894
    %977 = vmatprep.subr.bf16.mxu0 0
    %978 = vmatpush1.bf16.msra.mxu0 %v895
    %979 = vmatprep.subr.bf16.mxu0 0
    %980 = vmatpush1.bf16.msra.mxu0 0
    %981 = vmatprep.subr.bf16.mxu0 0
    %982 = vmatpush1.bf16.msra.mxu0 0
    %983 = vmatprep.subr.bf16.mxu0 0
    %984 = vmatpush1.bf16.msra.mxu0 0
    %985 = vmatprep.subr.bf16.mxu0 0
    %986 = vmatpush1.bf16.msra.mxu0 0
    %987 = vmatprep.subr.bf16.mxu0 0
    %988 = vmatpush1.bf16.msra.mxu0 0
    %989 = vmatprep.subr.bf16.mxu0 0
    %990 = vmatpush1.bf16.msra.mxu0 0
    %991 = vmatprep.subr.bf16.mxu0 0
    %992 = vmatpush1.bf16.msra.mxu0 0
    %993 = vmatprep.subr.bf16.mxu0 0
    %994 = vmatpush1.bf16.msra.mxu0 0
    %995 = vmatprep.subr.bf16.mxu0 0
    %996 = vmatpush1.bf16.msra.mxu0 0
    %997 = vmatprep.subr.bf16.mxu0 0
    %998 = vmatpush1.bf16.msra.mxu0 0
    %999 = vmatprep.subr.bf16.mxu0 0
    %1000 = vmatpush1.bf16.msra.mxu0 0
    %1001 = vmatprep.subr.bf16.mxu0 0
    %1002 = vmatpush1.bf16.msra.mxu0 0
    %1003 = vmatprep.subr.bf16.mxu0 0
    %1004 = vmatpush1.bf16.msra.mxu0 0
    %1005 = vmatprep.subr.bf16.mxu0 0
    %1006 = vmatpush1.bf16.msra.mxu0 0
    %1007 = vmatprep.mubr.bf16.mxu0 0
    %1008 = vmatmul.mubr.bf16.gmra.mrb[0].mxu0 %v973
    %v1009 = vpop.f32.mrb[0].mxu0
    %v1010 = vadd.f32 0.0, %v1009
    %v1011 = vpop.f32.mrb[0].mxu0
    %v1012 = vpop.f32.mrb[0].mxu0
    %v1013 = vpop.f32.mrb[0].mxu0
    %1014 = vdwg.mxu0
    %v1016 = vrot.slane %v1010, 6
    %v1018 = vadd.f32 %v880, %v1016
    %v1019 = vxor.u32 %v1018, 2147483648
    %v1020 = vmul.f32 %v1019, 1.442695
    %v1021 = vpow.pop %v1020
    %v1022 = vadd.f32 %v1021, 1.0
    %v1023 = vrcp.pop %v1022
    %v1024 = vmul.f32 1.0, %v1023
    %v1025 = vtanh.pop %v1018
    %v1027 = vrot.slane %v956, 6
    %v1029 = vmul.f32 %v1024, %v1027
    %1031 = vrot.lane.b32.xlu0 %v1025, 64
    %v1032 = vpop.permute.xlu0 %1031
    %v1034 = vmul.f32 %v1024, %v1032
    %1036 = vrot.lane.b32.xlu0 %v1034, 32
    %v1037 = vpop.permute.xlu0 %1036
    %v1039 = vadd.f32 %v1029, %v1037
    %v1040 = vtanh.pop %v1039
    %1042 = vrot.lane.b32.xlu0 %v1040, 64
    %v1043 = vpop.permute.xlu0 %1042
    %v1045 = vmul.f32 %v1024, %v1043
    %1047 = vrot.lane.b32.xlu0 %v1045, 32
    %v1048 = vpop.permute.xlu0 %1047
    %1050 = vst.msk [vmem:[#allocation2] sm:$0xc] %vm308, %v1048
    %v1051 = vpack.c.bf16 %v1045, %v1045
    %v1053 = vrot.slane %v1051, 1
    %1054 = vrot.lane.b32.xlu0 %v1053, 32
    %v1055 = vpop.permute.xlu0 %1054
    %v1057 = vsel %vm151, %v1055, 0
    %1059 = vmatprep.subr.bf16.mxu0 0
    %1060 = vmatpush1.bf16.msra.mxu0 %v894
    %1061 = vmatprep.subr.bf16.mxu0 0
    %1062 = vmatpush1.bf16.msra.mxu0 %v895
    %1063 = vmatprep.subr.bf16.mxu0 0
    %1064 = vmatpush1.bf16.msra.mxu0 0
    %1065 = vmatprep.subr.bf16.mxu0 0
    %1066 = vmatpush1.bf16.msra.mxu0 0
    %1067 = vmatprep.subr.bf16.mxu0 0
    %1068 = vmatpush1.bf16.msra.mxu0 0
    %1069 = vmatprep.subr.bf16.mxu0 0
    %1070 = vmatpush1.bf16.msra.mxu0 0
    %1071 = vmatprep.subr.bf16.mxu0 0
    %1072 = vmatpush1.bf16.msra.mxu0 0
    %1073 = vmatprep.subr.bf16.mxu0 0
    %1074 = vmatpush1.bf16.msra.mxu0 0
    %1075 = vmatprep.subr.bf16.mxu0 0
    %1076 = vmatpush1.bf16.msra.mxu0 0
    %1077 = vmatprep.subr.bf16.mxu0 0
    %1078 = vmatpush1.bf16.msra.mxu0 0
    %1079 = vmatprep.subr.bf16.mxu0 0
    %1080 = vmatpush1.bf16.msra.mxu0 0
    %1081 = vmatprep.subr.bf16.mxu0 0
    %1082 = vmatpush1.bf16.msra.mxu0 0
    %1083 = vmatprep.subr.bf16.mxu0 0
    %1084 = vmatpush1.bf16.msra.mxu0 0
    %1085 = vmatprep.subr.bf16.mxu0 0
    %1086 = vmatpush1.bf16.msra.mxu0 0
    %1087 = vmatprep.subr.bf16.mxu0 0
    %1088 = vmatpush1.bf16.msra.mxu0 0
    %1089 = vmatprep.subr.bf16.mxu0 0
    %1090 = vmatpush1.bf16.msra.mxu0 0
    %1091 = vmatprep.mubr.bf16.mxu0 0
    %1092 = vmatmul.mubr.bf16.gmra.mrb[0].mxu0 %v1057
    %v1093 = vpop.f32.mrb[0].mxu0
    %v1094 = vadd.f32 0.0, %v1093
    %v1095 = vpop.f32.mrb[0].mxu0
    %v1096 = vpop.f32.mrb[0].mxu0
    %v1097 = vpop.f32.mrb[0].mxu0
    %1098 = vdwg.mxu0
    %v1100 = vrot.slane %v1094, 4
    %v1102 = vadd.f32 %v880, %v1100
    %v1103 = vxor.u32 %v1102, 2147483648
    %v1104 = vmul.f32 %v1103, 1.442695
    %v1105 = vpow.pop %v1104
    %v1106 = vadd.f32 %v1105, 1.0
    %v1107 = vrcp.pop %v1106
    %v1108 = vmul.f32 1.0, %v1107
    %v1109 = vtanh.pop %v1102
    %v1111 = vrot.slane %v1039, 6
    %v1113 = vmul.f32 %v1108, %v1111
    %1115 = vrot.lane.b32.xlu0 %v1109, 64
    %v1116 = vpop.permute.xlu0 %1115
    %v1118 = vmul.f32 %v1108, %v1116
    %1120 = vrot.lane.b32.xlu0 %v1118, 32
    %v1121 = vpop.permute.xlu0 %1120
    %v1123 = vadd.f32 %v1113, %v1121
    %v1124 = vtanh.pop %v1123
    %1126 = vrot.lane.b32.xlu0 %v1124, 64
    %v1127 = vpop.permute.xlu0 %1126
    %v1129 = vmul.f32 %v1108, %v1127
    %1131 = vrot.lane.b32.xlu0 %v1129, 32
    %v1132 = vpop.permute.xlu0 %1131
    %1134 = vst.msk [vmem:[#allocation2] sm:$0x30] %vm393, %v1132
    %v1135 = vpack.c.bf16 %v1129, %v1129
    %v1137 = vrot.slane %v1135, 2
    %1138 = vrot.lane.b32.xlu0 %v1137, 32
    %v1139 = vpop.permute.xlu0 %1138
    %v1141 = vsel %vm151, %v1139, 0
    %1143 = vmatprep.subr.bf16.mxu0 0
    %1144 = vmatpush1.bf16.msra.mxu0 %v894
    %1145 = vmatprep.subr.bf16.mxu0 0
    %1146 = vmatpush1.bf16.msra.mxu0 %v895
    %1147 = vmatprep.subr.bf16.mxu0 0
    %1148 = vmatpush1.bf16.msra.mxu0 0
    %1149 = vmatprep.subr.bf16.mxu0 0
    %1150 = vmatpush1.bf16.msra.mxu0 0
    %1151 = vmatprep.subr.bf16.mxu0 0
    %1152 = vmatpush1.bf16.msra.mxu0 0
    %1153 = vmatprep.subr.bf16.mxu0 0
    %1154 = vmatpush1.bf16.msra.mxu0 0
    %1155 = vmatprep.subr.bf16.mxu0 0
    %1156 = vmatpush1.bf16.msra.mxu0 0
    %1157 = vmatprep.subr.bf16.mxu0 0
    %1158 = vmatpush1.bf16.msra.mxu0 0
    %1159 = vmatprep.subr.bf16.mxu0 0
    %1160 = vmatpush1.bf16.msra.mxu0 0
    %1161 = vmatprep.subr.bf16.mxu0 0
    %1162 = vmatpush1.bf16.msra.mxu0 0
    %1163 = vmatprep.subr.bf16.mxu0 0
    %1164 = vmatpush1.bf16.msra.mxu0 0
    %1165 = vmatprep.subr.bf16.mxu0 0
    %1166 = vmatpush1.bf16.msra.mxu0 0
    %1167 = vmatprep.subr.bf16.mxu0 0
    %1168 = vmatpush1.bf16.msra.mxu0 0
    %1169 = vmatprep.subr.bf16.mxu0 0
    %1170 = vmatpush1.bf16.msra.mxu0 0
    %1171 = vmatprep.subr.bf16.mxu0 0
    %1172 = vmatpush1.bf16.msra.mxu0 0
    %1173 = vmatprep.subr.bf16.mxu0 0
    %1174 = vmatpush1.bf16.msra.mxu0 0
    %1175 = vmatprep.mubr.bf16.mxu0 0
    %1176 = vmatmul.mubr.bf16.gmra.mrb[0].mxu0 %v1141
    %v1177 = vpop.f32.mrb[0].mxu0
    %v1178 = vadd.f32 0.0, %v1177
    %v1179 = vpop.f32.mrb[0].mxu0
    %v1180 = vpop.f32.mrb[0].mxu0
    %v1181 = vpop.f32.mrb[0].mxu0
    %1182 = vdwg.mxu0
    %v1184 = vrot.slane %v1178, 2
    %v1186 = vadd.f32 %v880, %v1184
    %v1187 = vxor.u32 %v1186, 2147483648
    %v1188 = vmul.f32 %v1187, 1.442695
    %v1189 = vpow.pop %v1188
    %v1190 = vadd.f32 %v1189, 1.0
    %v1191 = vrcp.pop %v1190
    %v1192 = vmul.f32 1.0, %v1191
    %v1193 = vtanh.pop %v1186
    %v1195 = vrot.slane %v1123, 6
    %v1197 = vmul.f32 %v1192, %v1195
    %1199 = vrot.lane.b32.xlu0 %v1193, 64
    %v1200 = vpop.permute.xlu0 %1199
    %v1202 = vmul.f32 %v1192, %v1200
    %1204 = vrot.lane.b32.xlu0 %v1202, 32
    %v1205 = vpop.permute.xlu0 %1204
    %v1207 = vadd.f32 %v1197, %v1205
    %v1208 = vtanh.pop %v1207
    %1210 = vrot.lane.b32.xlu0 %v1208, 64
    %v1211 = vpop.permute.xlu0 %1210
    %v1213 = vmul.f32 %v1192, %v1211
    %1215 = vrot.lane.b32.xlu0 %v1213, 32
    %v1216 = vpop.permute.xlu0 %1215
    %1218 = vst.msk [vmem:[#allocation2] sm:$0xc0] %vm478, %v1216
    %v1219 = vpack.c.bf16 %v1213, %v1213
    %v1221 = vrot.slane %v1219, 3
    %1222 = vrot.lane.b32.xlu0 %v1221, 32
    %v1223 = vpop.permute.xlu0 %1222
    %v1225 = vsel %vm151, %v1223, 0
    %1227 = vmatprep.subr.bf16.mxu0 0
    %1228 = vmatpush1.bf16.msra.mxu0 %v894
    %1229 = vmatprep.subr.bf16.mxu0 0
    %1230 = vmatpush1.bf16.msra.mxu0 %v895
    %1231 = vmatprep.subr.bf16.mxu0 0
    %1232 = vmatpush1.bf16.msra.mxu0 0
    %1233 = vmatprep.subr.bf16.mxu0 0
    %1234 = vmatpush1.bf16.msra.mxu0 0
    %1235 = vmatprep.subr.bf16.mxu0 0
    %1236 = vmatpush1.bf16.msra.mxu0 0
    %1237 = vmatprep.subr.bf16.mxu0 0
    %1238 = vmatpush1.bf16.msra.mxu0 0
    %1239 = vmatprep.subr.bf16.mxu0 0
    %1240 = vmatpush1.bf16.msra.mxu0 0
    %1241 = vmatprep.subr.bf16.mxu0 0
    %1242 = vmatpush1.bf16.msra.mxu0 0
    %1243 = vmatprep.subr.bf16.mxu0 0
    %1244 = vmatpush1.bf16.msra.mxu0 0
    %1245 = vmatprep.subr.bf16.mxu0 0
    %1246 = vmatpush1.bf16.msra.mxu0 0
    %1247 = vmatprep.subr.bf16.mxu0 0
    %1248 = vmatpush1.bf16.msra.mxu0 0
    %1249 = vmatprep.subr.bf16.mxu0 0
    %1250 = vmatpush1.bf16.msra.mxu0 0
    %1251 = vmatprep.subr.bf16.mxu0 0
    %1252 = vmatpush1.bf16.msra.mxu0 0
    %1253 = vmatprep.subr.bf16.mxu0 0
    %1254 = vmatpush1.bf16.msra.mxu0 0
    %1255 = vmatprep.subr.bf16.mxu0 0
    %1256 = vmatpush1.bf16.msra.mxu0 0
    %1257 = vmatprep.subr.bf16.mxu0 0
    %1258 = vmatpush1.bf16.msra.mxu0 0
    %1259 = vmatprep.mubr.bf16.mxu0 0
    %1260 = vmatmul.mubr.bf16.gmra.mrb[0].mxu0 %v1225
    %v1261 = vpop.f32.mrb[0].mxu0
    %v1262 = vadd.f32 0.0, %v1261
    %v1263 = vpop.f32.mrb[0].mxu0
    %v1264 = vpop.f32.mrb[0].mxu0
    %v1265 = vpop.f32.mrb[0].mxu0
    %1266 = vdwg.mxu0
    %v1267 = vadd.f32 %v883, %v1262
    %v1268 = vxor.u32 %v1267, 2147483648
    %v1269 = vmul.f32 %v1268, 1.442695
    %v1270 = vpow.pop %v1269
    %v1271 = vadd.f32 %v1270, 1.0
    %v1272 = vrcp.pop %v1271
    %v1273 = vmul.f32 1.0, %v1272
    %v1274 = vtanh.pop %v1267
    %v1276 = vrot.slane %v1207, 6
    %v1278 = vmul.f32 %v1273, %v1276
    %1280 = vrot.lane.b32.xlu0 %v1274, 64
    %v1281 = vpop.permute.xlu0 %1280
    %v1283 = vmul.f32 %v1273, %v1281
    %1285 = vrot.lane.b32.xlu0 %v1283, 32
    %v1286 = vpop.permute.xlu0 %1285
    %v1288 = vadd.f32 %v1278, %v1286
    %v1289 = vtanh.pop %v1288
    %1291 = vrot.lane.b32.xlu0 %v1289, 64
    %v1292 = vpop.permute.xlu0 %1291
    %v1294 = vmul.f32 %v1273, %v1292
    %1296 = vrot.lane.b32.xlu0 %v1294, 32
    %v1297 = vpop.permute.xlu0 %1296
    %1299 = vst.msk [vmem:[#allocation2 + $0x8] sm:$0x3] %vm224, %v1297
    %v1300 = vpack.c.bf16 %v1294, %v1294
    %1302 = vrot.lane.b32.xlu0 %v1300, 32
    %v1303 = vpop.permute.xlu0 %1302
    %v1305 = vsel %vm151, %v1303, 0
    %1307 = vmatprep.subr.bf16.mxu0 0
    %1308 = vmatpush1.bf16.msra.mxu0 %v894
    %1309 = vmatprep.subr.bf16.mxu0 0
    %1310 = vmatpush1.bf16.msra.mxu0 %v895
    %1311 = vmatprep.subr.bf16.mxu0 0
    %1312 = vmatpush1.bf16.msra.mxu0 0
    %1313 = vmatprep.subr.bf16.mxu0 0
    %1314 = vmatpush1.bf16.msra.mxu0 0
    %1315 = vmatprep.subr.bf16.mxu0 0
    %1316 = vmatpush1.bf16.msra.mxu0 0
    %1317 = vmatprep.subr.bf16.mxu0 0
    %1318 = vmatpush1.bf16.msra.mxu0 0
    %1319 = vmatprep.subr.bf16.mxu0 0
    %1320 = vmatpush1.bf16.msra.mxu0 0
    %1321 = vmatprep.subr.bf16.mxu0 0
    %1322 = vmatpush1.bf16.msra.mxu0 0
    %1323 = vmatprep.subr.bf16.mxu0 0
    %1324 = vmatpush1.bf16.msra.mxu0 0
    %1325 = vmatprep.subr.bf16.mxu0 0
    %1326 = vmatpush1.bf16.msra.mxu0 0
    %1327 = vmatprep.subr.bf16.mxu0 0
    %1328 = vmatpush1.bf16.msra.mxu0 0
    %1329 = vmatprep.subr.bf16.mxu0 0
    %1330 = vmatpush1.bf16.msra.mxu0 0
    %1331 = vmatprep.subr.bf16.mxu0 0
    %1332 = vmatpush1.bf16.msra.mxu0 0
    %1333 = vmatprep.subr.bf16.mxu0 0
    %1334 = vmatpush1.bf16.msra.mxu0 0
    %1335 = vmatprep.subr.bf16.mxu0 0
    %1336 = vmatpush1.bf16.msra.mxu0 0
    %1337 = vmatprep.subr.bf16.mxu0 0
    %1338 = vmatpush1.bf16.msra.mxu0 0
    %1339 = vmatprep.mubr.bf16.mxu0 0
    %1340 = vmatmul.mubr.bf16.gmra.mrb[0].mxu0 %v1305
    %v1341 = vpop.f32.mrb[0].mxu0
    %v1342 = vadd.f32 0.0, %v1341
    %v1343 = vpop.f32.mrb[0].mxu0
    %v1344 = vpop.f32.mrb[0].mxu0
    %v1345 = vpop.f32.mrb[0].mxu0
    %1346 = vdwg.mxu0
    %v1348 = vrot.slane %v1342, 6
    %v1350 = vadd.f32 %v883, %v1348
    %v1351 = vxor.u32 %v1350, 2147483648
    %v1352 = vmul.f32 %v1351, 1.442695
    %v1353 = vpow.pop %v1352
    %v1354 = vadd.f32 %v1353, 1.0
    %v1355 = vrcp.pop %v1354
    %v1356 = vmul.f32 1.0, %v1355
    %v1357 = vtanh.pop %v1350
    %v1359 = vrot.slane %v1288, 6
    %v1361 = vmul.f32 %v1356, %v1359
    %1363 = vrot.lane.b32.xlu0 %v1357, 64
    %v1364 = vpop.permute.xlu0 %1363
    %v1366 = vmul.f32 %v1356, %v1364
    %1368 = vrot.lane.b32.xlu0 %v1366, 32
    %v1369 = vpop.permute.xlu0 %1368
    %v1371 = vadd.f32 %v1361, %v1369
    %v1372 = vtanh.pop %v1371
    %1374 = vrot.lane.b32.xlu0 %v1372, 64
    %v1375 = vpop.permute.xlu0 %1374
    %v1377 = vmul.f32 %v1356, %v1375
    %1379 = vrot.lane.b32.xlu0 %v1377, 32
    %v1380 = vpop.permute.xlu0 %1379
    %1382 = vst.msk [vmem:[#allocation2 + $0x8] sm:$0xc] %vm308, %v1380
    %v1383 = vpack.c.bf16 %v1377, %v1377
    %v1385 = vrot.slane %v1383, 1
    %1386 = vrot.lane.b32.xlu0 %v1385, 32
    %v1387 = vpop.permute.xlu0 %1386
    %v1389 = vsel %vm151, %v1387, 0
    %1391 = vmatprep.subr.bf16.mxu0 0
    %1392 = vmatpush1.bf16.msra.mxu0 %v894
    %1393 = vmatprep.subr.bf16.mxu0 0
    %1394 = vmatpush1.bf16.msra.mxu0 %v895
    %1395 = vmatprep.subr.bf16.mxu0 0
    %1396 = vmatpush1.bf16.msra.mxu0 0
    %1397 = vmatprep.subr.bf16.mxu0 0
    %1398 = vmatpush1.bf16.msra.mxu0 0
    %1399 = vmatprep.subr.bf16.mxu0 0
    %1400 = vmatpush1.bf16.msra.mxu0 0
    %1401 = vmatprep.subr.bf16.mxu0 0
    %1402 = vmatpush1.bf16.msra.mxu0 0
    %1403 = vmatprep.subr.bf16.mxu0 0
    %1404 = vmatpush1.bf16.msra.mxu0 0
    %1405 = vmatprep.subr.bf16.mxu0 0
    %1406 = vmatpush1.bf16.msra.mxu0 0
    %1407 = vmatprep.subr.bf16.mxu0 0
    %1408 = vmatpush1.bf16.msra.mxu0 0
    %1409 = vmatprep.subr.bf16.mxu0 0
    %1410 = vmatpush1.bf16.msra.mxu0 0
    %1411 = vmatprep.subr.bf16.mxu0 0
    %1412 = vmatpush1.bf16.msra.mxu0 0
    %1413 = vmatprep.subr.bf16.mxu0 0
    %1414 = vmatpush1.bf16.msra.mxu0 0
    %1415 = vmatprep.subr.bf16.mxu0 0
    %1416 = vmatpush1.bf16.msra.mxu0 0
    %1417 = vmatprep.subr.bf16.mxu0 0
    %1418 = vmatpush1.bf16.msra.mxu0 0
    %1419 = vmatprep.subr.bf16.mxu0 0
    %1420 = vmatpush1.bf16.msra.mxu0 0
    %1421 = vmatprep.subr.bf16.mxu0 0
    %1422 = vmatpush1.bf16.msra.mxu0 0
    %1423 = vmatprep.mubr.bf16.mxu0 0
    %1424 = vmatmul.mubr.bf16.gmra.mrb[0].mxu0 %v1389
    %v1425 = vpop.f32.mrb[0].mxu0
    %v1426 = vadd.f32 0.0, %v1425
    %v1427 = vpop.f32.mrb[0].mxu0
    %v1428 = vpop.f32.mrb[0].mxu0
    %v1429 = vpop.f32.mrb[0].mxu0
    %1430 = vdwg.mxu0
    %v1432 = vrot.slane %v1426, 4
    %v1434 = vadd.f32 %v883, %v1432
    %v1435 = vxor.u32 %v1434, 2147483648
    %v1436 = vmul.f32 %v1435, 1.442695
    %v1437 = vpow.pop %v1436
    %v1438 = vadd.f32 %v1437, 1.0
    %v1439 = vrcp.pop %v1438
    %v1440 = vmul.f32 1.0, %v1439
    %v1441 = vtanh.pop %v1434
    %v1443 = vrot.slane %v1371, 6
    %v1445 = vmul.f32 %v1440, %v1443
    %1447 = vrot.lane.b32.xlu0 %v1441, 64
    %v1448 = vpop.permute.xlu0 %1447
    %v1450 = vmul.f32 %v1440, %v1448
    %1452 = vrot.lane.b32.xlu0 %v1450, 32
    %v1453 = vpop.permute.xlu0 %1452
    %v1455 = vadd.f32 %v1445, %v1453
    %v1456 = vtanh.pop %v1455
    %1458 = vrot.lane.b32.xlu0 %v1456, 64
    %v1459 = vpop.permute.xlu0 %1458
    %v1461 = vmul.f32 %v1440, %v1459
    %1463 = vrot.lane.b32.xlu0 %v1461, 32
    %v1464 = vpop.permute.xlu0 %1463
    %1466 = vst.msk [vmem:[#allocation2 + $0x8] sm:$0x30] %vm393, %v1464
    %v1467 = vpack.c.bf16 %v1461, %v1461
    %v1469 = vrot.slane %v1467, 2
    %1470 = vrot.lane.b32.xlu0 %v1469, 32
    %v1471 = vpop.permute.xlu0 %1470
    %v1473 = vsel %vm151, %v1471, 0
    %1475 = vmatprep.subr.bf16.mxu0 0
    %1476 = vmatpush1.bf16.msra.mxu0 %v894
    %1477 = vmatprep.subr.bf16.mxu0 0
    %1478 = vmatpush1.bf16.msra.mxu0 %v895
    %1479 = vmatprep.subr.bf16.mxu0 0
    %1480 = vmatpush1.bf16.msra.mxu0 0
    %1481 = vmatprep.subr.bf16.mxu0 0
    %1482 = vmatpush1.bf16.msra.mxu0 0
    %1483 = vmatprep.subr.bf16.mxu0 0
    %1484 = vmatpush1.bf16.msra.mxu0 0
    %1485 = vmatprep.subr.bf16.mxu0 0
    %1486 = vmatpush1.bf16.msra.mxu0 0
    %1487 = vmatprep.subr.bf16.mxu0 0
    %1488 = vmatpush1.bf16.msra.mxu0 0
    %1489 = vmatprep.subr.bf16.mxu0 0
    %1490 = vmatpush1.bf16.msra.mxu0 0
    %1491 = vmatprep.subr.bf16.mxu0 0
    %1492 = vmatpush1.bf16.msra.mxu0 0
    %1493 = vmatprep.subr.bf16.mxu0 0
    %1494 = vmatpush1.bf16.msra.mxu0 0
    %1495 = vmatprep.subr.bf16.mxu0 0
    %1496 = vmatpush1.bf16.msra.mxu0 0
    %1497 = vmatprep.subr.bf16.mxu0 0
    %1498 = vmatpush1.bf16.msra.mxu0 0
    %1499 = vmatprep.subr.bf16.mxu0 0
    %1500 = vmatpush1.bf16.msra.mxu0 0
    %1501 = vmatprep.subr.bf16.mxu0 0
    %1502 = vmatpush1.bf16.msra.mxu0 0
    %1503 = vmatprep.subr.bf16.mxu0 0
    %1504 = vmatpush1.bf16.msra.mxu0 0
    %1505 = vmatprep.subr.bf16.mxu0 0
    %1506 = vmatpush1.bf16.msra.mxu0 0
    %1507 = vmatprep.mubr.bf16.mxu0 0
    %1508 = vmatmul.mubr.bf16.gmra.mrb[0].mxu0 %v1473
    %v1509 = vpop.f32.mrb[0].mxu0
    %v1510 = vadd.f32 0.0, %v1509
    %v1511 = vpop.f32.mrb[0].mxu0
    %v1512 = vpop.f32.mrb[0].mxu0
    %v1513 = vpop.f32.mrb[0].mxu0
    %1514 = vdwg.mxu0
    %v1516 = vrot.slane %v1510, 2
    %v1518 = vadd.f32 %v883, %v1516
    %v1519 = vxor.u32 %v1518, 2147483648
    %v1520 = vmul.f32 %v1519, 1.442695
    %v1521 = vpow.pop %v1520
    %v1522 = vadd.f32 %v1521, 1.0
    %v1523 = vrcp.pop %v1522
    %v1524 = vmul.f32 1.0, %v1523
    %v1525 = vtanh.pop %v1518
    %v1527 = vrot.slane %v1455, 6
    %v1529 = vmul.f32 %v1524, %v1527
    %1531 = vrot.lane.b32.xlu0 %v1525, 64
    %v1532 = vpop.permute.xlu0 %1531
    %v1534 = vmul.f32 %v1524, %v1532
    %1536 = vrot.lane.b32.xlu0 %v1534, 32
    %v1537 = vpop.permute.xlu0 %1536
    %v1539 = vadd.f32 %v1529, %v1537
    %v1540 = vtanh.pop %v1539
    %1542 = vrot.lane.b32.xlu0 %v1540, 64
    %v1543 = vpop.permute.xlu0 %1542
    %v1545 = vmul.f32 %v1524, %v1543
    %1547 = vrot.lane.b32.xlu0 %v1545, 32
    %v1548 = vpop.permute.xlu0 %1547
    %1550 = vst.msk [vmem:[#allocation2 + $0x8] sm:$0xc0] %vm478, %v1548
    %v1551 = vld [vmem:[#allocation2] sm:$0xff]
    %v1552 = vld [vmem:[#allocation2 + $0x8] sm:$0xff]
    %v1553 = vpack.c.bf16 %v1552, %v1551
    %v1554 = vld [vmem:[#allocation5] sm:$0xf]
    %v1555 = vld [vmem:[#allocation5 + $0x4] sm:$0xf]
    %v1556 = vld [vmem:[#allocation5 + $0x8] sm:$0xf]
    %v1557 = vld [vmem:[#allocation5 + $0xc] sm:$0xf]
    %v1558 = vld [vmem:[#allocation7] sm:$0x1]
    %v1560 = vlaneseq
    %v1561 = vshrl.u32 %v1560, 7
    %v1562 = vsub.s32 0, %v1561
    %v1563 = vrot.slane %v1558, %v1562
    %v1569 = vunpack.c.l.b16 %v1554
    %v1570 = vunpack.c.l.b16 %v1555
    %v1571 = vunpack.c.l.b16 %v1556
    %v1572 = vunpack.c.l.b16 %v1557
    %v1573 = vpack.c.b16 %v1570, %v1569
    %v1574 = vpack.c.b16 %v1572, %v1571
    %v1578 = vsel %vm151, %v1553, 0
    %1580 = vmatprep.subr.bf16.mxu0 0
    %1581 = vmatpush1.bf16.msra.mxu0 %v1573
    %1582 = vmatprep.subr.bf16.mxu0 0
    %1583 = vmatpush1.bf16.msra.mxu0 %v1574
    %1584 = vmatprep.subr.bf16.mxu0 0
    %1585 = vmatpush1.bf16.msra.mxu0 0
    %1586 = vmatprep.subr.bf16.mxu0 0
    %1587 = vmatpush1.bf16.msra.mxu0 0
    %1588 = vmatprep.subr.bf16.mxu0 0
    %1589 = vmatpush1.bf16.msra.mxu0 0
    %1590 = vmatprep.subr.bf16.mxu0 0
    %1591 = vmatpush1.bf16.msra.mxu0 0
    %1592 = vmatprep.subr.bf16.mxu0 0
    %1593 = vmatpush1.bf16.msra.mxu0 0
    %1594 = vmatprep.subr.bf16.mxu0 0
    %1595 = vmatpush1.bf16.msra.mxu0 0
    %1596 = vmatprep.subr.bf16.mxu0 0
    %1597 = vmatpush1.bf16.msra.mxu0 0
    %1598 = vmatprep.subr.bf16.mxu0 0
    %1599 = vmatpush1.bf16.msra.mxu0 0
    %1600 = vmatprep.subr.bf16.mxu0 0
    %1601 = vmatpush1.bf16.msra.mxu0 0
    %1602 = vmatprep.subr.bf16.mxu0 0
    %1603 = vmatpush1.bf16.msra.mxu0 0
    %1604 = vmatprep.subr.bf16.mxu0 0
    %1605 = vmatpush1.bf16.msra.mxu0 0
    %1606 = vmatprep.subr.bf16.mxu0 0
    %1607 = vmatpush1.bf16.msra.mxu0 0
    %1608 = vmatprep.subr.bf16.mxu0 0
    %1609 = vmatpush1.bf16.msra.mxu0 0
    %1610 = vmatprep.subr.bf16.mxu0 0
    %1611 = vmatpush1.bf16.msra.mxu0 0
    %1612 = vmatprep.mubr.bf16.mxu0 0
    %1613 = vmatmul.mubr.bf16.gmra.mrb[0].mxu0 %v1578
    %v1614 = vpop.f32.mrb[0].mxu0
    %v1615 = vadd.f32 %v1563, %v1614
    %v1616 = vpop.f32.mrb[0].mxu0
    %v1617 = vpop.f32.mrb[0].mxu0
    %v1618 = vadd.f32 %v1563, %v1617
    %v1619 = vpop.f32.mrb[0].mxu0
    %1620 = vdwg.mxu0
    %1621 = vst [vmem:[%s9] sm:$0xff] %v1615
    %1622 = vst [vmem:[%s9 + $0x8] sm:$0xff] %v1618
    // Predicated region
    $region50: #{simple_lstm_many2many_forward.1} parent=1 // pred_check
      _
    $region51: #{simple_lstm_many2many_forward.1} parent=1 // pred_check_branch
      %1624 = sbr.rel (0) target = $region53
    $region52: #{simple_lstm_many2many_forward.1} parent=1 // pred_region
      _
    $region53: #{simple_lstm_many2many_forward.1} parent=1 // pred_fallthru
      _
    // Predicated region
    $region54: #{simple_lstm_many2many_forward.1} parent=1 // pred_check
      _
    $region55: #{simple_lstm_many2many_forward.1} parent=1 // pred_check_branch
      %1626 = sbr.rel (0) target = $region57
    $region56: #{simple_lstm_many2many_forward.1} parent=1 // pred_region
      _
    $region57: #{simple_lstm_many2many_forward.1} parent=1 // pred_fallthru
      _
    %1627 = vsyncpa [#allocation4], 1
    %1628 = vsyncpa [#allocation6], 1

</llo_original>
